<compile_context>
chip_gen: v7x
topology: tpu7x:2x2x1
jax: 0.10.0
libtpu: 0.0.40
codegen_flags: <defaults>
</compile_context>

<pallas_src>
import functools

import jax
import jax.numpy as jnp
from jax.experimental import pallas as pl
from jax.experimental.pallas import tpu as pltpu


# Order in which (pre-fused) parameter arrays are passed to the kernel.
PARAM_ORDER = [
    "wqkv", "bqkv", "wo", "bo",
    "ln1_g", "ln1_b",
    "wf1", "bf1", "wf2", "bf2",
    "ln2_g", "ln2_b",
    "wg1", "bg1", "wg2_row", "bg2",
]


def _layer_norm(x, g, b, eps=1e-12):   # BERT-style eps
    mu = jnp.mean(x, axis=-1, keepdims=True)
    var = jnp.mean((x - mu) ** 2, axis=-1, keepdims=True)
    return (x - mu) * jax.lax.rsqrt(var + eps) * g + b


def our_transformer_kernel(
    # data (per batch block)
    src_ref, bias_ref,
    # encoder params (VMEM-resident, bf16 matmul weights / f32 biases+LN)
    wqkv_ref, bqkv_ref, wo_ref, bo_ref,
    ln1g_ref, ln1b_ref, wf1_ref, bf1_ref, wf2_ref, bf2_ref,
    ln2g_ref, ln2b_ref,
    # Slot_Gate params
    wg1_ref, bg1_ref, wg2_ref, bg2_ref,
    # outputs
    enc_out_ref, gate_out_ref,
):
    TB, Sp, D = src_ref.shape
    M = TB * Sp

    src_bf = src_ref[...].reshape(M, D)                      # [M, D] bf16 (MXU operand)
    src_f32 = src_bf.astype(jnp.float32)                     # f32 residual copy
    bias = bias_ref[...]                                     # [TB, 1, Sp] additive mask bias

    # --- fused QKV projection: one [M, D] x [D, 3D] bf16 matmul, f32 acc.
    #     1/sqrt(D) scale already folded into the Q columns of wqkv/bqkv.
    qkv_f32 = (jnp.dot(src_bf, wqkv_ref[...],
                       preferred_element_type=jnp.float32) + bqkv_ref[...])
    qkv = qkv_f32.astype(jnp.bfloat16)                       # single cast; f32 copy dies
    q = qkv[:, 0 * D:1 * D].reshape(TB, Sp, D)
    k = qkv[:, 1 * D:2 * D].reshape(TB, Sp, D)
    v = qkv[:, 2 * D:3 * D].reshape(TB, Sp, D)

    # --- masked single-head self-attention (softmax in f32)
    scores = jnp.einsum("bqd,bkd->bqk", q, k,
                        preferred_element_type=jnp.float32)
    scores = scores + bias                                   # broadcast over queries
    m = jnp.max(scores, axis=-1, keepdims=True)
    p = jnp.exp(scores - m)
    denom = jnp.sum(p, axis=-1, keepdims=True)
    attn = p * pl.reciprocal(denom, approx=True)             # EUP, not VALU divide

    ctx = jnp.einsum("bqk,bkd->bqd",
                     attn.astype(jnp.bfloat16), v,
                     preferred_element_type=jnp.float32)
    attn_out = (jnp.dot(ctx.reshape(M, D).astype(jnp.bfloat16), wo_ref[...],
                        preferred_element_type=jnp.float32) + bo_ref[...])

    h = _layer_norm(src_f32 + attn_out, ln1g_ref[...], ln1b_ref[...])   # [M, D] f32

    # --- feed-forward (bf16 MXU operands, f32 accumulation; GELU out downcast
    #     immediately so only the bf16 [M, D_FF] copy stays live into wf2)
    ff = (jnp.dot(h.astype(jnp.bfloat16), wf1_ref[...],
                  preferred_element_type=jnp.float32) + bf1_ref[...])
    ff = jax.nn.gelu(ff, approximate=True).astype(jnp.bfloat16)
    ff2 = (jnp.dot(ff, wf2_ref[...],
                   preferred_element_type=jnp.float32) + bf2_ref[...])
    enc2d = _layer_norm(h + ff2, ln2g_ref[...], ln2b_ref[...])          # [M, D] f32

    enc = enc2d.reshape(TB, Sp, D)
    enc_out_ref[...] = enc.astype(enc_out_ref.dtype)          # bf16 store (lane-dense)

    # --- Slot_Gate: sigmoid(fc2(fc1(enc[:, 0, :])))   (no nonlinearity between)
    h0 = enc[:, 0, :]                                         # [TB, D] CLS token (f32)
    g1 = (jnp.dot(h0.astype(jnp.bfloat16), wg1_ref[...],
                  preferred_element_type=jnp.float32) + bg1_ref[...])   # [TB, D/2]
    # fc2 has output width 1 -> VPU multiply + lane reduce (no N=1 matmul)
    g2 = jnp.sum(g1 * wg2_ref[...], axis=-1, keepdims=True) + bg2_ref[...]
    gate_out_ref[...] = jax.nn.sigmoid(g2)[:, None, :].astype(gate_out_ref.dtype)


def _auto_block_b(B, Sp, D, d_ff):
    """Largest batch block that keeps grid >= 2 (v7x megacore) and M modest."""
    max_rows = 512                       # keep f32 [M, 3D]/[M, D_FF] intermediates tame
    best = 1
    for cand in range(1, B + 1):
        if B % cand:
            continue
        if B >= 2 and B // cand < 2:     # keep both v7x TensorCores busy
            continue
        if cand * Sp <= max_rows:
            best = max(best, cand)
    return best


def _vmem_estimate_bytes(block_b, Sp, D, d_ff, params):
    """Rough per-step VMEM footprint: resident weights + buffered I/O + live temps."""
    w_bytes = sum(int(v.size) * v.dtype.itemsize for v in params.values())
    M = block_b * Sp
    io_block = (block_b * Sp * D * 2        # src bf16
                + block_b * Sp * 4          # mask bias f32
                + block_b * Sp * D * 2      # enc out bf16
                + block_b * 4)              # gate out
    inter = (M * 3 * D * (4 + 2)            # qkv f32 + bf16
             + block_b * Sp * Sp * 4 * 2    # scores / probs f32
             + M * d_ff * (4 + 2)           # ff f32 + bf16
             + M * D * 4 * 4)               # residual / LN temps
    return w_bytes + 2 * io_block + inter   # inputs/outputs double-buffered


def our_transformer_forward(text_emb, sys_audio, user_audio, text_mask, params,
                            *, block_b=None):
    """Returns (encoder_last_hidden_state [B, S+2, D] bf16, gate_output [B, 1])."""
    B, S, D = text_emb.shape
    d_ff = params["wf1"].shape[1]

    # Cheap glue in plain JAX: concat text/audio embeddings and masks, pad the
    # sequence to a sublane multiple, precompute the additive attention bias.
    # Padded positions are masked via the bias and sliced off on return.
    src = jnp.concatenate(
        [text_emb, sys_audio[:, None, :], user_audio[:, None, :]], axis=1)
    mask = jnp.concatenate(
        [text_mask.astype(jnp.float32), jnp.ones((B, 2), jnp.float32)], axis=1)

    S2 = S + 2
    Sp = ((S2 + 7) // 8) * 8
    pad = Sp - S2
    if pad:
        src = jnp.pad(src, ((0, 0), (0, pad), (0, 0)))
        mask = jnp.pad(mask, ((0, 0), (0, pad)))
    src = src.astype(jnp.bfloat16)                           # halve input DMA bytes
    bias3 = ((mask - 1.0) * 1e9)[:, None, :]                 # [B, 1, Sp] additive bias

    if block_b is None:
        block_b = _auto_block_b(B, Sp, D, d_ff)
    assert B % block_b == 0, "block_b must divide the batch size"
    grid = (B // block_b,)

    in_specs = [
        # per-block activations (double-buffered by the pipeline)
        pl.BlockSpec((block_b, Sp, D), lambda i: (i, 0, 0)),
        pl.BlockSpec((block_b, 1, Sp), lambda i: (i, 0, 0)),
    ] + [
        # weights / biases: whole-array VMEM-resident, fetched once
        pl.BlockSpec(memory_space=pltpu.MemorySpace.VMEM)
    ] * len(PARAM_ORDER)

    out_specs = (
        pl.BlockSpec((block_b, Sp, D), lambda i: (i, 0, 0)),
        pl.BlockSpec((block_b, 1, 1), lambda i: (i, 0, 0)),
    )

    # Scoped VMEM: v5e default (16 MiB) can't hold resident weights; cap at
    # 64 MiB so the request is valid on v7x's smaller physical VMEM.
    est = _vmem_estimate_bytes(block_b, Sp, D, d_ff, params)
    vmem_limit = int(min(max(2 * est, 32 * 1024 * 1024), 64 * 1024 * 1024))

    # Advisory cost estimate for the XLA scheduler.
    M_total = B * Sp
    w_bytes = sum(int(v.size) * v.dtype.itemsize for v in params.values())
    flops = (2 * M_total * D * (3 * D)          # fused QKV
             + 4 * B * Sp * Sp * D              # scores + attn@V
             + 2 * M_total * D * D              # output proj
             + 4 * M_total * D * d_ff           # FFN (wf1 + wf2)
             + 2 * B * D * (D // 2))            # Slot_Gate fc1
    transcendentals = B * Sp * Sp + M_total * d_ff + B
    bytes_accessed = (int(src.size) * 2 + int(bias3.size) * 4
                      + M_total * D * 2 + B * 4 + w_bytes)
    cost = pl.CostEstimate(flops=int(flops),
                           transcendentals=int(transcendentals),
                           bytes_accessed=int(bytes_accessed))

    enc, gate = pl.pallas_call(
        our_transformer_kernel,
        grid=grid,
        out_shape=(
            jax.ShapeDtypeStruct((B, Sp, D), jnp.bfloat16),   # halve output DMA
            jax.ShapeDtypeStruct((B, 1, 1), jnp.float32),
        ),
        in_specs=in_specs,
        out_specs=out_specs,
        compiler_params=pltpu.CompilerParams(
            dimension_semantics=("parallel",),
            vmem_limit_bytes=vmem_limit),
        cost_estimate=cost,
    )(src, bias3, *[params[name] for name in PARAM_ORDER])

    return enc[:, :S2, :], gate[:, :, 0]


def init_params(key, d_model, d_ff):
    """Deterministic synthetic parameter init (shapes follow the nn.Module)."""
    half = d_model // 2
    shapes = {
        "wq": (d_model, d_model), "wk": (d_model, d_model),
        "wv": (d_model, d_model), "wo": (d_model, d_model),
        "wf1": (d_model, d_ff), "wf2": (d_ff, d_model),
        "wg1": (d_model, half),      # Slot_Gate.fc1: dim -> dim/2
        "wg2": (half, 1),            # Slot_Gate.fc2: dim/2 -> 1
    }
    params = {}
    keys = jax.random.split(key, len(shapes))
    for (name, shp), k in zip(sorted(shapes.items()), keys):
        fan_in = shp[0]
        params[name] = (jax.random.normal(k, shp, jnp.float32)
                        * (1.0 / jnp.sqrt(jnp.float32(fan_in))))
    params["bq"] = jnp.zeros((1, d_model), jnp.float32)
    params["bk"] = jnp.zeros((1, d_model), jnp.float32)
    params["bv"] = jnp.zeros((1, d_model), jnp.float32)
    params["bo"] = jnp.zeros((1, d_model), jnp.float32)
    params["bf1"] = jnp.zeros((1, d_ff), jnp.float32)
    params["bf2"] = jnp.zeros((1, d_model), jnp.float32)
    params["bg1"] = jnp.full((1, half), 0.01, jnp.float32)
    params["bg2"] = jnp.full((1, 1), 0.01, jnp.float32)
    params["ln1_g"] = jnp.ones((1, d_model), jnp.float32)
    params["ln1_b"] = jnp.zeros((1, d_model), jnp.float32)
    params["ln2_g"] = jnp.ones((1, d_model), jnp.float32)
    params["ln2_b"] = jnp.zeros((1, d_model), jnp.float32)
    return params


def prepare_params(raw):
    """Fuse QKV (with the 1/sqrt(D) scale folded into Q), lay fc2 out as a row
    vector, cast all matmul weights to bf16."""
    d_model = raw["wq"].shape[0]
    scale = 1.0 / jnp.sqrt(jnp.float32(d_model))
    p = {}
    p["wqkv"] = jnp.concatenate(
        [raw["wq"] * scale, raw["wk"], raw["wv"]], axis=1).astype(jnp.bfloat16)
    p["bqkv"] = jnp.concatenate(
        [raw["bq"] * scale, raw["bk"], raw["bv"]], axis=1)
    p["wo"] = raw["wo"].astype(jnp.bfloat16)
    p["bo"] = raw["bo"]
    p["ln1_g"], p["ln1_b"] = raw["ln1_g"], raw["ln1_b"]
    p["wf1"] = raw["wf1"].astype(jnp.bfloat16)
    p["bf1"] = raw["bf1"]
    p["wf2"] = raw["wf2"].astype(jnp.bfloat16)
    p["bf2"] = raw["bf2"]
    p["ln2_g"], p["ln2_b"] = raw["ln2_g"], raw["ln2_b"]
    p["wg1"] = raw["wg1"].astype(jnp.bfloat16)
    p["bg1"] = raw["bg1"]
    p["wg2_row"] = raw["wg2"].T          # [1, D/2] for VPU multiply + reduce
    p["bg2"] = raw["bg2"]
    return p


if __name__ == "__main__":
    key = jax.random.PRNGKey(0)
    B, S, D, D_FF = 2, 8, 128, 256       # D lane-aligned (128) per the layout rule

    k_text, k_sys, k_user, k_params = jax.random.split(key, 4)
    text_emb = jax.random.normal(k_text, (B, S, D), jnp.float32)   # BERT stand-in
    sys_audio = jax.random.normal(k_sys, (B, D), jnp.float32)      # system audio emb
    user_audio = jax.random.normal(k_user, (B, D), jnp.float32)    # user audio emb
    # pretend the last 2 text tokens of each example are padding
    text_mask = jnp.ones((B, S), jnp.float32).at[:, -2:].set(0.0)

    params = prepare_params(init_params(k_params, D, D_FF))

    run = jax.jit(functools.partial(our_transformer_forward))
    enc_last_hidden, gate_output = run(text_emb, sys_audio, user_audio,
                                       text_mask, params)
    jax.block_until_ready((enc_last_hidden, gate_output))

    assert enc_last_hidden.shape == (B, S + 2, D)
    assert gate_output.shape == (B, 1)
    assert bool(jnp.all(jnp.isfinite(enc_last_hidden.astype(jnp.float32))))
    assert bool(jnp.all(jnp.isfinite(gate_output)))
    print("KERNEL_OK")
</pallas_src>

<mosaic_0001>
module attributes {stable_mosaic.version = 11 : i64} {
  func.func @our_transformer_kernel(%arg0: i32, %arg1: memref<1x16x128xbf16, #tpu.memory_space<vmem>>, %arg2: memref<1x1x16xf32, #tpu.memory_space<vmem>>, %arg3: memref<128x384xbf16, #tpu.memory_space<vmem>>, %arg4: memref<1x384xf32, #tpu.memory_space<vmem>>, %arg5: memref<128x128xbf16, #tpu.memory_space<vmem>>, %arg6: memref<1x128xf32, #tpu.memory_space<vmem>>, %arg7: memref<1x128xf32, #tpu.memory_space<vmem>>, %arg8: memref<1x128xf32, #tpu.memory_space<vmem>>, %arg9: memref<128x256xbf16, #tpu.memory_space<vmem>>, %arg10: memref<1x256xf32, #tpu.memory_space<vmem>>, %arg11: memref<256x128xbf16, #tpu.memory_space<vmem>>, %arg12: memref<1x128xf32, #tpu.memory_space<vmem>>, %arg13: memref<1x128xf32, #tpu.memory_space<vmem>>, %arg14: memref<1x128xf32, #tpu.memory_space<vmem>>, %arg15: memref<128x64xbf16, #tpu.memory_space<vmem>>, %arg16: memref<1x64xf32, #tpu.memory_space<vmem>>, %arg17: memref<1x64xf32, #tpu.memory_space<vmem>>, %arg18: memref<1x1xf32, #tpu.memory_space<vmem>>, %arg19: memref<1x16x128xbf16, #tpu.memory_space<vmem>>, %arg20: memref<1x1x1xf32, #tpu.memory_space<vmem>>) attributes {dimension_semantics = [#tpu.dimension_semantics<parallel>], iteration_bounds = array<i64: 2>, scalar_prefetch = 0 : i64, scratch_operands = 0 : i64, tpu.core_type = #tpu.core_type<tc>, window_params = [{transform_indices = @transform_0, window_bounds = array<i64: 1, 16, 128>}, {transform_indices = @transform_1, window_bounds = array<i64: 1, 1, 16>}, {pipeline_mode = #tpu.pipeline_mode<synchronous>, transform_indices = @transform_2, window_bounds = array<i64: 128, 384>}, {pipeline_mode = #tpu.pipeline_mode<synchronous>, transform_indices = @transform_3, window_bounds = array<i64: 1, 384>}, {pipeline_mode = #tpu.pipeline_mode<synchronous>, transform_indices = @transform_4, window_bounds = array<i64: 128, 128>}, {pipeline_mode = #tpu.pipeline_mode<synchronous>, transform_indices = @transform_5, window_bounds = array<i64: 1, 128>}, {pipeline_mode = #tpu.pipeline_mode<synchronous>, transform_indices = @transform_6, window_bounds = array<i64: 1, 128>}, {pipeline_mode = #tpu.pipeline_mode<synchronous>, transform_indices = @transform_7, window_bounds = array<i64: 1, 128>}, {pipeline_mode = #tpu.pipeline_mode<synchronous>, transform_indices = @transform_8, window_bounds = array<i64: 128, 256>}, {pipeline_mode = #tpu.pipeline_mode<synchronous>, transform_indices = @transform_9, window_bounds = array<i64: 1, 256>}, {pipeline_mode = #tpu.pipeline_mode<synchronous>, transform_indices = @transform_10, window_bounds = array<i64: 256, 128>}, {pipeline_mode = #tpu.pipeline_mode<synchronous>, transform_indices = @transform_11, window_bounds = array<i64: 1, 128>}, {pipeline_mode = #tpu.pipeline_mode<synchronous>, transform_indices = @transform_12, window_bounds = array<i64: 1, 128>}, {pipeline_mode = #tpu.pipeline_mode<synchronous>, transform_indices = @transform_13, window_bounds = array<i64: 1, 128>}, {pipeline_mode = #tpu.pipeline_mode<synchronous>, transform_indices = @transform_14, window_bounds = array<i64: 128, 64>}, {pipeline_mode = #tpu.pipeline_mode<synchronous>, transform_indices = @transform_15, window_bounds = array<i64: 1, 64>}, {pipeline_mode = #tpu.pipeline_mode<synchronous>, transform_indices = @transform_16, window_bounds = array<i64: 1, 64>}, {pipeline_mode = #tpu.pipeline_mode<synchronous>, transform_indices = @transform_17, window_bounds = array<i64: 1, 1>}, {transform_indices = @transform_18, window_bounds = array<i64: 1, 16, 128>}, {transform_indices = @transform_19, window_bounds = array<i64: 1, 1, 1>}]} {
    %c0 = arith.constant 0 : index
    %c0_0 = arith.constant 0 : index
    %c0_1 = arith.constant 0 : index
    %0 = vector.load %arg1[%c0, %c0_0, %c0_1] : memref<1x16x128xbf16, #tpu.memory_space<vmem>>, vector<1x16x128xbf16>
    %1 = vector.shape_cast %0 : vector<1x16x128xbf16> to vector<16x128xbf16>
    %2 = arith.extf %1 : vector<16x128xbf16> to vector<16x128xf32>
    %c0_2 = arith.constant 0 : index
    %c0_3 = arith.constant 0 : index
    %c0_4 = arith.constant 0 : index
    %3 = vector.load %arg2[%c0_2, %c0_3, %c0_4] : memref<1x1x16xf32, #tpu.memory_space<vmem>>, vector<1x1x16xf32>
    %c0_5 = arith.constant 0 : index
    %c0_6 = arith.constant 0 : index
    %4 = vector.load %arg3[%c0_5, %c0_6] : memref<128x384xbf16, #tpu.memory_space<vmem>>, vector<128x384xbf16>
    %cst = arith.constant dense<0.000000e+00> : vector<16x384xf32>
    %5 = tpu.matmul %1, %4, %cst {dimension_numbers = #tpu.dot_dimension_numbers<[1], [0], [0], [1], [0, 0, 1, 1], [], []>} : vector<16x128xbf16>, vector<128x384xbf16>, vector<16x384xf32> -> vector<16x384xf32>
    %c0_7 = arith.constant 0 : index
    %c0_8 = arith.constant 0 : index
    %6 = vector.load %arg4[%c0_7, %c0_8] : memref<1x384xf32, #tpu.memory_space<vmem>>, vector<1x384xf32>
    %7 = vector.broadcast %6 : vector<1x384xf32> to vector<16x384xf32>
    %8 = arith.addf %5, %7 : vector<16x384xf32>
    %9 = arith.truncf %8 : vector<16x384xf32> to vector<16x384xbf16>
    %10 = vector.extract_strided_slice %9 {offsets = [0, 0], sizes = [16, 128], strides = [1, 1]} : vector<16x384xbf16> to vector<16x128xbf16>
    %11 = vector.shape_cast %10 : vector<16x128xbf16> to vector<1x16x128xbf16>
    %12 = vector.extract_strided_slice %9 {offsets = [0, 128], sizes = [16, 128], strides = [1, 1]} : vector<16x384xbf16> to vector<16x128xbf16>
    %13 = vector.shape_cast %12 : vector<16x128xbf16> to vector<1x16x128xbf16>
    %14 = vector.extract_strided_slice %9 {offsets = [0, 256], sizes = [16, 128], strides = [1, 1]} : vector<16x384xbf16> to vector<16x128xbf16>
    %15 = vector.shape_cast %14 : vector<16x128xbf16> to vector<1x16x128xbf16>
    "tpu.trace_start"() <{level = 10 : i32, message = "bqd,bkd->bqk"}> : () -> ()
    %cst_9 = arith.constant dense<0.000000e+00> : vector<1x16x16xf32>
    %16 = tpu.matmul %11, %13, %cst_9 {dimension_numbers = #tpu.dot_dimension_numbers<[2], [2], [1], [1], [0, 0, 0, 1, 1, 1], [0], [0]>} : vector<1x16x128xbf16>, vector<1x16x128xbf16>, vector<1x16x16xf32> -> vector<1x16x16xf32>
    "tpu.trace_stop"() : () -> ()
    %17 = vector.broadcast %3 : vector<1x1x16xf32> to vector<1x16x16xf32>
    %18 = arith.addf %16, %17 : vector<1x16x16xf32>
    %cst_10 = arith.constant dense<0xFF800000> : vector<1x16xf32>
    %19 = vector.multi_reduction <maximumf>, %18, %cst_10 [2] : vector<1x16x16xf32> to vector<1x16xf32>
    %20 = vector.shape_cast %19 : vector<1x16xf32> to vector<1x16x1xf32>
    %21 = vector.broadcast %20 : vector<1x16x1xf32> to vector<1x16x16xf32>
    %22 = arith.subf %18, %21 : vector<1x16x16xf32>
    %23 = math.exp %22 : vector<1x16x16xf32>
    %cst_11 = arith.constant dense<0.000000e+00> : vector<1x16xf32>
    %24 = vector.multi_reduction <add>, %23, %cst_11 [2] : vector<1x16x16xf32> to vector<1x16xf32>
    %25 = vector.shape_cast %24 : vector<1x16xf32> to vector<1x16x1xf32>
    %26 = tpu.reciprocal %25 {approx = true} : vector<1x16x1xf32> -> vector<1x16x1xf32>
    %27 = vector.broadcast %26 : vector<1x16x1xf32> to vector<1x16x16xf32>
    %28 = arith.mulf %23, %27 : vector<1x16x16xf32>
    %29 = arith.truncf %28 : vector<1x16x16xf32> to vector<1x16x16xbf16>
    "tpu.trace_start"() <{level = 10 : i32, message = "bqk,bkd->bqd"}> : () -> ()
    %cst_12 = arith.constant dense<0.000000e+00> : vector<1x16x128xf32>
    %30 = tpu.matmul %29, %15, %cst_12 {dimension_numbers = #tpu.dot_dimension_numbers<[2], [1], [1], [2], [0, 0, 0, 1, 1, 2], [0], [0]>} : vector<1x16x16xbf16>, vector<1x16x128xbf16>, vector<1x16x128xf32> -> vector<1x16x128xf32>
    "tpu.trace_stop"() : () -> ()
    %31 = vector.shape_cast %30 : vector<1x16x128xf32> to vector<16x128xf32>
    %32 = arith.truncf %31 : vector<16x128xf32> to vector<16x128xbf16>
    %c0_13 = arith.constant 0 : index
    %c0_14 = arith.constant 0 : index
    %33 = vector.load %arg5[%c0_13, %c0_14] : memref<128x128xbf16, #tpu.memory_space<vmem>>, vector<128x128xbf16>
    %cst_15 = arith.constant dense<0.000000e+00> : vector<16x128xf32>
    %34 = tpu.matmul %32, %33, %cst_15 {dimension_numbers = #tpu.dot_dimension_numbers<[1], [0], [0], [1], [0, 0, 1, 1], [], []>} : vector<16x128xbf16>, vector<128x128xbf16>, vector<16x128xf32> -> vector<16x128xf32>
    %c0_16 = arith.constant 0 : index
    %c0_17 = arith.constant 0 : index
    %35 = vector.load %arg6[%c0_16, %c0_17] : memref<1x128xf32, #tpu.memory_space<vmem>>, vector<1x128xf32>
    %36 = vector.broadcast %35 : vector<1x128xf32> to vector<16x128xf32>
    %37 = arith.addf %34, %36 : vector<16x128xf32>
    %38 = arith.addf %2, %37 : vector<16x128xf32>
    %c0_18 = arith.constant 0 : index
    %c0_19 = arith.constant 0 : index
    %39 = vector.load %arg7[%c0_18, %c0_19] : memref<1x128xf32, #tpu.memory_space<vmem>>, vector<1x128xf32>
    %c0_20 = arith.constant 0 : index
    %c0_21 = arith.constant 0 : index
    %40 = vector.load %arg8[%c0_20, %c0_21] : memref<1x128xf32, #tpu.memory_space<vmem>>, vector<1x128xf32>
    %cst_22 = arith.constant dense<0.000000e+00> : vector<16xf32>
    %41 = vector.multi_reduction <add>, %38, %cst_22 [1] : vector<16x128xf32> to vector<16xf32>
    %42 = vector.shape_cast %41 : vector<16xf32> to vector<16x1xf32>
    %cst_23 = arith.constant 1.280000e+02 : f32
    %43 = vector.broadcast %cst_23 : f32 to vector<16x1xf32>
    %44 = arith.divf %42, %43 : vector<16x1xf32>
    %45 = vector.broadcast %44 : vector<16x1xf32> to vector<16x128xf32>
    %46 = arith.subf %38, %45 : vector<16x128xf32>
    %47 = arith.mulf %46, %46 : vector<16x128xf32>
    %cst_24 = arith.constant dense<0.000000e+00> : vector<16xf32>
    %48 = vector.multi_reduction <add>, %47, %cst_24 [1] : vector<16x128xf32> to vector<16xf32>
    %49 = vector.shape_cast %48 : vector<16xf32> to vector<16x1xf32>
    %cst_25 = arith.constant 1.280000e+02 : f32
    %50 = vector.broadcast %cst_25 : f32 to vector<16x1xf32>
    %51 = arith.divf %49, %50 : vector<16x1xf32>
    %52 = vector.broadcast %44 : vector<16x1xf32> to vector<16x128xf32>
    %53 = arith.subf %38, %52 : vector<16x128xf32>
    %cst_26 = arith.constant 9.99999996E-13 : f32
    %54 = vector.broadcast %cst_26 : f32 to vector<16x1xf32>
    %55 = arith.addf %51, %54 : vector<16x1xf32>
    %56 = math.rsqrt %55 : vector<16x1xf32>
    %57 = vector.broadcast %56 : vector<16x1xf32> to vector<16x128xf32>
    %58 = arith.mulf %53, %57 : vector<16x128xf32>
    %59 = vector.broadcast %39 : vector<1x128xf32> to vector<16x128xf32>
    %60 = arith.mulf %58, %59 : vector<16x128xf32>
    %61 = vector.broadcast %40 : vector<1x128xf32> to vector<16x128xf32>
    %62 = arith.addf %60, %61 : vector<16x128xf32>
    %63 = arith.truncf %62 : vector<16x128xf32> to vector<16x128xbf16>
    %c0_27 = arith.constant 0 : index
    %c0_28 = arith.constant 0 : index
    %64 = vector.load %arg9[%c0_27, %c0_28] : memref<128x256xbf16, #tpu.memory_space<vmem>>, vector<128x256xbf16>
    %cst_29 = arith.constant dense<0.000000e+00> : vector<16x256xf32>
    %65 = tpu.matmul %63, %64, %cst_29 {dimension_numbers = #tpu.dot_dimension_numbers<[1], [0], [0], [1], [0, 0, 1, 1], [], []>} : vector<16x128xbf16>, vector<128x256xbf16>, vector<16x256xf32> -> vector<16x256xf32>
    %c0_30 = arith.constant 0 : index
    %c0_31 = arith.constant 0 : index
    %66 = vector.load %arg10[%c0_30, %c0_31] : memref<1x256xf32, #tpu.memory_space<vmem>>, vector<1x256xf32>
    %67 = vector.broadcast %66 : vector<1x256xf32> to vector<16x256xf32>
    %68 = arith.addf %65, %67 : vector<16x256xf32>
    %69 = arith.mulf %68, %68 : vector<16x256xf32>
    %70 = arith.mulf %68, %69 : vector<16x256xf32>
    %cst_32 = arith.constant 4.471500e-02 : f32
    %71 = vector.broadcast %cst_32 : f32 to vector<16x256xf32>
    %72 = arith.mulf %71, %70 : vector<16x256xf32>
    %73 = arith.addf %68, %72 : vector<16x256xf32>
    %cst_33 = arith.constant 0.797884583 : f32
    %74 = vector.broadcast %cst_33 : f32 to vector<16x256xf32>
    %75 = arith.mulf %74, %73 : vector<16x256xf32>
    %76 = math.tanh %75 : vector<16x256xf32>
    %cst_34 = arith.constant 1.000000e+00 : f32
    %77 = vector.broadcast %cst_34 : f32 to vector<16x256xf32>
    %78 = arith.addf %77, %76 : vector<16x256xf32>
    %cst_35 = arith.constant 5.000000e-01 : f32
    %79 = vector.broadcast %cst_35 : f32 to vector<16x256xf32>
    %80 = arith.mulf %79, %78 : vector<16x256xf32>
    %81 = arith.mulf %68, %80 : vector<16x256xf32>
    %82 = arith.truncf %81 : vector<16x256xf32> to vector<16x256xbf16>
    %c0_36 = arith.constant 0 : index
    %c0_37 = arith.constant 0 : index
    %83 = vector.load %arg11[%c0_36, %c0_37] : memref<256x128xbf16, #tpu.memory_space<vmem>>, vector<256x128xbf16>
    %cst_38 = arith.constant dense<0.000000e+00> : vector<16x128xf32>
    %84 = tpu.matmul %82, %83, %cst_38 {dimension_numbers = #tpu.dot_dimension_numbers<[1], [0], [0], [1], [0, 0, 1, 1], [], []>} : vector<16x256xbf16>, vector<256x128xbf16>, vector<16x128xf32> -> vector<16x128xf32>
    %c0_39 = arith.constant 0 : index
    %c0_40 = arith.constant 0 : index
    %85 = vector.load %arg12[%c0_39, %c0_40] : memref<1x128xf32, #tpu.memory_space<vmem>>, vector<1x128xf32>
    %86 = vector.broadcast %85 : vector<1x128xf32> to vector<16x128xf32>
    %87 = arith.addf %84, %86 : vector<16x128xf32>
    %88 = arith.addf %62, %87 : vector<16x128xf32>
    %c0_41 = arith.constant 0 : index
    %c0_42 = arith.constant 0 : index
    %89 = vector.load %arg13[%c0_41, %c0_42] : memref<1x128xf32, #tpu.memory_space<vmem>>, vector<1x128xf32>
    %c0_43 = arith.constant 0 : index
    %c0_44 = arith.constant 0 : index
    %90 = vector.load %arg14[%c0_43, %c0_44] : memref<1x128xf32, #tpu.memory_space<vmem>>, vector<1x128xf32>
    %cst_45 = arith.constant dense<0.000000e+00> : vector<16xf32>
    %91 = vector.multi_reduction <add>, %88, %cst_45 [1] : vector<16x128xf32> to vector<16xf32>
    %92 = vector.shape_cast %91 : vector<16xf32> to vector<16x1xf32>
    %cst_46 = arith.constant 1.280000e+02 : f32
    %93 = vector.broadcast %cst_46 : f32 to vector<16x1xf32>
    %94 = arith.divf %92, %93 : vector<16x1xf32>
    %95 = vector.broadcast %94 : vector<16x1xf32> to vector<16x128xf32>
    %96 = arith.subf %88, %95 : vector<16x128xf32>
    %97 = arith.mulf %96, %96 : vector<16x128xf32>
    %cst_47 = arith.constant dense<0.000000e+00> : vector<16xf32>
    %98 = vector.multi_reduction <add>, %97, %cst_47 [1] : vector<16x128xf32> to vector<16xf32>
    %99 = vector.shape_cast %98 : vector<16xf32> to vector<16x1xf32>
    %cst_48 = arith.constant 1.280000e+02 : f32
    %100 = vector.broadcast %cst_48 : f32 to vector<16x1xf32>
    %101 = arith.divf %99, %100 : vector<16x1xf32>
    %102 = vector.broadcast %94 : vector<16x1xf32> to vector<16x128xf32>
    %103 = arith.subf %88, %102 : vector<16x128xf32>
    %cst_49 = arith.constant 9.99999996E-13 : f32
    %104 = vector.broadcast %cst_49 : f32 to vector<16x1xf32>
    %105 = arith.addf %101, %104 : vector<16x1xf32>
    %106 = math.rsqrt %105 : vector<16x1xf32>
    %107 = vector.broadcast %106 : vector<16x1xf32> to vector<16x128xf32>
    %108 = arith.mulf %103, %107 : vector<16x128xf32>
    %109 = vector.broadcast %89 : vector<1x128xf32> to vector<16x128xf32>
    %110 = arith.mulf %108, %109 : vector<16x128xf32>
    %111 = vector.broadcast %90 : vector<1x128xf32> to vector<16x128xf32>
    %112 = arith.addf %110, %111 : vector<16x128xf32>
    %113 = vector.shape_cast %112 : vector<16x128xf32> to vector<1x16x128xf32>
    %114 = arith.truncf %113 : vector<1x16x128xf32> to vector<1x16x128xbf16>
    %c0_50 = arith.constant 0 : index
    %c0_51 = arith.constant 0 : index
    %c0_52 = arith.constant 0 : index
    %115 = vector.load %arg19[%c0_50, %c0_51, %c0_52] : memref<1x16x128xbf16, #tpu.memory_space<vmem>>, vector<1x16x128xbf16>
    tpu.vector_store %arg19[%c0_50, %c0_51, %c0_52], %114 {strides = array<i32>} : memref<1x16x128xbf16, #tpu.memory_space<vmem>>, vector<1x16x128xbf16>,
    %116 = vector.extract_strided_slice %113 {offsets = [0, 0, 0], sizes = [1, 1, 128], strides = [1, 1, 1]} : vector<1x16x128xf32> to vector<1x1x128xf32>
    %117 = vector.shape_cast %116 : vector<1x1x128xf32> to vector<1x128xf32>
    %118 = arith.truncf %117 : vector<1x128xf32> to vector<1x128xbf16>
    %c0_53 = arith.constant 0 : index
    %c0_54 = arith.constant 0 : index
    %119 = vector.load %arg15[%c0_53, %c0_54] : memref<128x64xbf16, #tpu.memory_space<vmem>>, vector<128x64xbf16>
    %cst_55 = arith.constant dense<0.000000e+00> : vector<1x64xf32>
    %120 = tpu.matmul %118, %119, %cst_55 {dimension_numbers = #tpu.dot_dimension_numbers<[1], [0], [0], [1], [0, 0, 1, 1], [], []>} : vector<1x128xbf16>, vector<128x64xbf16>, vector<1x64xf32> -> vector<1x64xf32>
    %c0_56 = arith.constant 0 : index
    %c0_57 = arith.constant 0 : index
    %121 = vector.load %arg16[%c0_56, %c0_57] : memref<1x64xf32, #tpu.memory_space<vmem>>, vector<1x64xf32>
    %122 = arith.addf %120, %121 : vector<1x64xf32>
    %c0_58 = arith.constant 0 : index
    %c0_59 = arith.constant 0 : index
    %123 = vector.load %arg17[%c0_58, %c0_59] : memref<1x64xf32, #tpu.memory_space<vmem>>, vector<1x64xf32>
    %124 = arith.mulf %122, %123 : vector<1x64xf32>
    %cst_60 = arith.constant dense<0.000000e+00> : vector<1xf32>
    %125 = vector.multi_reduction <add>, %124, %cst_60 [1] : vector<1x64xf32> to vector<1xf32>
    %126 = vector.shape_cast %125 : vector<1xf32> to vector<1x1xf32>
    %c0_61 = arith.constant 0 : index
    %c0_62 = arith.constant 0 : index
    %127 = vector.load %arg18[%c0_61, %c0_62] : memref<1x1xf32, #tpu.memory_space<vmem>>, vector<1x1xf32>
    %128 = arith.addf %126, %127 : vector<1x1xf32>
    %129 = arith.negf %128 : vector<1x1xf32>
    %130 = math.exp %129 : vector<1x1xf32>
    %cst_63 = arith.constant 1.000000e+00 : f32
    %131 = vector.broadcast %cst_63 : f32 to vector<1x1xf32>
    %132 = arith.addf %131, %130 : vector<1x1xf32>
    %133 = arith.divf %131, %132 : vector<1x1xf32>
    %134 = vector.shape_cast %133 : vector<1x1xf32> to vector<1x1x1xf32>
    %c0_64 = arith.constant 0 : index
    %c0_65 = arith.constant 0 : index
    %c0_66 = arith.constant 0 : index
    %135 = vector.load %arg20[%c0_64, %c0_65, %c0_66] : memref<1x1x1xf32, #tpu.memory_space<vmem>>, vector<1x1x1xf32>
    tpu.vector_store %arg20[%c0_64, %c0_65, %c0_66], %134 {strides = array<i32>} : memref<1x1x1xf32, #tpu.memory_space<vmem>>, vector<1x1x1xf32>,
    return
  }
  func.func @transform_0(%arg0: i32) -> (i32, i32, i32) {
    %c0_i32 = arith.constant 0 : i32
    %c0_i32_0 = arith.constant 0 : i32
    %c0_i32_1 = arith.constant 0 : i32
    return %arg0, %c0_i32, %c0_i32_0 : i32, i32, i32
  }
  func.func @transform_1(%arg0: i32) -> (i32, i32, i32) {
    %c0_i32 = arith.constant 0 : i32
    %c0_i32_0 = arith.constant 0 : i32
    %c0_i32_1 = arith.constant 0 : i32
    return %arg0, %c0_i32, %c0_i32_0 : i32, i32, i32
  }
  func.func @transform_2(%arg0: i32) -> (i32, i32) {
    %c0_i32 = arith.constant 0 : i32
    %c0_i32_0 = arith.constant 0 : i32
    %c0_i32_1 = arith.constant 0 : i32
    return %c0_i32, %c0_i32_0 : i32, i32
  }
  func.func @transform_3(%arg0: i32) -> (i32, i32) {
    %c0_i32 = arith.constant 0 : i32
    %c0_i32_0 = arith.constant 0 : i32
    %c0_i32_1 = arith.constant 0 : i32
    return %c0_i32, %c0_i32_0 : i32, i32
  }
  func.func @transform_4(%arg0: i32) -> (i32, i32) {
    %c0_i32 = arith.constant 0 : i32
    %c0_i32_0 = arith.constant 0 : i32
    %c0_i32_1 = arith.constant 0 : i32
    return %c0_i32, %c0_i32_0 : i32, i32
  }
  func.func @transform_5(%arg0: i32) -> (i32, i32) {
    %c0_i32 = arith.constant 0 : i32
    %c0_i32_0 = arith.constant 0 : i32
    %c0_i32_1 = arith.constant 0 : i32
    return %c0_i32, %c0_i32_0 : i32, i32
  }
  func.func @transform_6(%arg0: i32) -> (i32, i32) {
    %c0_i32 = arith.constant 0 : i32
    %c0_i32_0 = arith.constant 0 : i32
    %c0_i32_1 = arith.constant 0 : i32
    return %c0_i32, %c0_i32_0 : i32, i32
  }
  func.func @transform_7(%arg0: i32) -> (i32, i32) {
    %c0_i32 = arith.constant 0 : i32
    %c0_i32_0 = arith.constant 0 : i32
    %c0_i32_1 = arith.constant 0 : i32
    return %c0_i32, %c0_i32_0 : i32, i32
  }
  func.func @transform_8(%arg0: i32) -> (i32, i32) {
    %c0_i32 = arith.constant 0 : i32
    %c0_i32_0 = arith.constant 0 : i32
    %c0_i32_1 = arith.constant 0 : i32
    return %c0_i32, %c0_i32_0 : i32, i32
  }
  func.func @transform_9(%arg0: i32) -> (i32, i32) {
    %c0_i32 = arith.constant 0 : i32
    %c0_i32_0 = arith.constant 0 : i32
    %c0_i32_1 = arith.constant 0 : i32
    return %c0_i32, %c0_i32_0 : i32, i32
  }
  func.func @transform_10(%arg0: i32) -> (i32, i32) {
    %c0_i32 = arith.constant 0 : i32
    %c0_i32_0 = arith.constant 0 : i32
    %c0_i32_1 = arith.constant 0 : i32
    return %c0_i32, %c0_i32_0 : i32, i32
  }
  func.func @transform_11(%arg0: i32) -> (i32, i32) {
    %c0_i32 = arith.constant 0 : i32
    %c0_i32_0 = arith.constant 0 : i32
    %c0_i32_1 = arith.constant 0 : i32
    return %c0_i32, %c0_i32_0 : i32, i32
  }
  func.func @transform_12(%arg0: i32) -> (i32, i32) {
    %c0_i32 = arith.constant 0 : i32
    %c0_i32_0 = arith.constant 0 : i32
    %c0_i32_1 = arith.constant 0 : i32
    return %c0_i32, %c0_i32_0 : i32, i32
  }
  func.func @transform_13(%arg0: i32) -> (i32, i32) {
    %c0_i32 = arith.constant 0 : i32
    %c0_i32_0 = arith.constant 0 : i32
    %c0_i32_1 = arith.constant 0 : i32
    return %c0_i32, %c0_i32_0 : i32, i32
  }
  func.func @transform_14(%arg0: i32) -> (i32, i32) {
    %c0_i32 = arith.constant 0 : i32
    %c0_i32_0 = arith.constant 0 : i32
    %c0_i32_1 = arith.constant 0 : i32
    return %c0_i32, %c0_i32_0 : i32, i32
  }
  func.func @transform_15(%arg0: i32) -> (i32, i32) {
    %c0_i32 = arith.constant 0 : i32
    %c0_i32_0 = arith.constant 0 : i32
    %c0_i32_1 = arith.constant 0 : i32
    return %c0_i32, %c0_i32_0 : i32, i32
  }
  func.func @transform_16(%arg0: i32) -> (i32, i32) {
    %c0_i32 = arith.constant 0 : i32
    %c0_i32_0 = arith.constant 0 : i32
    %c0_i32_1 = arith.constant 0 : i32
    return %c0_i32, %c0_i32_0 : i32, i32
  }
  func.func @transform_17(%arg0: i32) -> (i32, i32) {
    %c0_i32 = arith.constant 0 : i32
    %c0_i32_0 = arith.constant 0 : i32
    %c0_i32_1 = arith.constant 0 : i32
    return %c0_i32, %c0_i32_0 : i32, i32
  }
  func.func @transform_18(%arg0: i32) -> (i32, i32, i32) {
    %c0_i32 = arith.constant 0 : i32
    %c0_i32_0 = arith.constant 0 : i32
    %c0_i32_1 = arith.constant 0 : i32
    return %arg0, %c0_i32, %c0_i32_0 : i32, i32, i32
  }
  func.func @transform_19(%arg0: i32) -> (i32, i32, i32) {
    %c0_i32 = arith.constant 0 : i32
    %c0_i32_0 = arith.constant 0 : i32
    %c0_i32_1 = arith.constant 0 : i32
    return %arg0, %c0_i32, %c0_i32_0 : i32, i32, i32
  }
}

</mosaic_0001>

<llo_original>
// kernel: our_transformer_forward.1
$region0: #{our_transformer_forward.1}
  #allocation0 [shape = 'u32[]', space=smem, size = 0x4, offset = 0x4, fixed_abs, tag = 'smem constant byte address 0x4 - core index']
  #allocation1 [shape = 'u32[144,128]{1,0:T(1,128)}', space=vmem, size = 0x12000, scoped, tag = 'internal scratch']
  #allocation2 [shape = 'f32[1,1]{1,0:T(1,128)S(1)}', space=vmem, size = 0x200, scoped, tag = 'scoped memory for our_transformer_forward.1']
  %s0 = inlined_call_operand.vmem [shape: bf16[2,16,128], index: 0, kind: input, shape index: {}]
  %s1 = inlined_call_operand.vmem [shape: f32[2,1,16], index: 1, kind: input, shape index: {}]
  %s2 = inlined_call_operand.vmem [shape: bf16[128,384], index: 2, kind: input, shape index: {}]
  %s3 = inlined_call_operand.vmem [shape: f32[1,384], index: 3, kind: input, shape index: {}]
  %s4 = inlined_call_operand.hbm [shape: bf16[128,128], index: 4, kind: input, shape index: {}]
  %s5 = inlined_call_operand.vmem [shape: f32[1,128], index: 5, kind: input, shape index: {}]
  %s6 = inlined_call_operand.vmem [shape: f32[1,128], index: 6, kind: input, shape index: {}]
  %s7 = inlined_call_operand.vmem [shape: f32[1,128], index: 7, kind: input, shape index: {}]
  %s8 = inlined_call_operand.hbm [shape: bf16[128,256], index: 8, kind: input, shape index: {}]
  %s9 = inlined_call_operand.vmem [shape: f32[1,256], index: 9, kind: input, shape index: {}]
  %s10 = inlined_call_operand.hbm [shape: bf16[256,128], index: 10, kind: input, shape index: {}]
  %s11 = inlined_call_operand.vmem [shape: f32[1,128], index: 11, kind: input, shape index: {}]
  %s12 = inlined_call_operand.vmem [shape: f32[1,128], index: 12, kind: input, shape index: {}]
  %s13 = inlined_call_operand.vmem [shape: f32[1,128], index: 13, kind: input, shape index: {}]
  %s14 = inlined_call_operand.vmem [shape: bf16[128,64], index: 14, kind: input, shape index: {}]
  %s15 = inlined_call_operand.vmem [shape: f32[1,64], index: 15, kind: input, shape index: {}]
  %s16 = inlined_call_operand.vmem [shape: f32[1,64], index: 16, kind: input, shape index: {}]
  %s17 = inlined_call_operand.<no memory space> [shape: f32[1,1], index: 17, kind: input, shape index: {}]
  %s18 = inlined_call_operand.vmem [shape: bf16[2,16,128], index: 18, kind: output, shape index: {0}]
  %s19 = inlined_call_operand.vmem [shape: f32[2,1,1], index: 19, kind: output, shape index: {1}]
  %20 = xla_tuple %s18, %s19
  %s21 = sld [smem:[#allocation0]]
  $region125: #{our_transformer_forward.1} parent=0
    _
  %s23 = ssub.s32 1, %s21
  %s24 = scalar_select 0, %s23, %s21
  %v25 = vstv %s17
  %26 = vst [vmem:[#allocation2] sm:$0x1] %v25
  $region1: #{our_transformer_forward.1} parent=0
    #allocation3 [shape = 'u8[32768]{0}', space=vmem, size = 0x8000, scoped, tag = 'input window, operand 4, single buffered']
    #allocation4 [shape = 's32[2]{0}', space=sflag, size = 0x8, scoped, tag = 'scoped memory for our_transformer_forward.1']
    #allocation5 [shape = 'u8[65536]{0}', space=vmem, size = 0x10000, scoped, tag = 'input window, operand 8, single buffered']
    #allocation6 [shape = 's32[1]{0}', space=sflag, size = 0x4, scoped, tag = 'scoped memory for our_transformer_forward.1']
    #allocation7 [shape = 'u8[65536]{0}', space=vmem, size = 0x10000, scoped, tag = 'input window, operand 10, single buffered']
    %27 = vsyncpa [#allocation4], 0
    %28 = vsyncpa [#allocation6], 0
    loop: start=0, step=1, limit=4
    $region2: #{our_transformer_forward.1} parent=1 // loop_pre_header
      _
    $region3: #{our_transformer_forward.1} parent=1 // loop_header
      %s30 = sphi 0, %s34
      %p31 = scmp.ge.s32.totalorder %s30, 4
      %s40 = sphi 0, %s42
      %s43 = sphi 0, %s40
      %s44 = sphi 0, %s43
      %s60 = sphi 0, %s44
      %s66 = sphi 0, %s68
      %s69 = sphi 0, %s66
      %s70 = sphi 0, %s69
      %s86 = sphi 0, %s70
      %s90 = sphi 0, %s90
      %s92 = sphi 0, %s90
      %s93 = sphi 0, %s92
      %s107 = sphi 0, %s93
      %s111 = sphi 0, %s111
      %s113 = sphi 0, %s111
      %s114 = sphi 0, %s113
      %s128 = sphi 0, %s114
      %s132 = sphi 0, %s132
      %s134 = sphi 0, %s132
      %s135 = sphi 0, %s134
      %s149 = sphi 0, %s135
      %s153 = sphi 0, %s153
      %s155 = sphi 0, %s153
      %s156 = sphi 0, %s155
      %s170 = sphi 0, %s156
      %s174 = sphi 0, %s174
      %s176 = sphi 0, %s174
      %s177 = sphi 0, %s176
      %s191 = sphi 0, %s177
      %s195 = sphi 0, %s195
      %s197 = sphi 0, %s195
      %s198 = sphi 0, %s197
      %s212 = sphi 0, %s198
      %s216 = sphi 0, %s216
      %s218 = sphi 0, %s216
      %s219 = sphi 0, %s218
      %s233 = sphi 0, %s219
      %s237 = sphi 0, %s237
      %s239 = sphi 0, %s237
      %s240 = sphi 0, %s239
      %s254 = sphi 0, %s240
      %s258 = sphi 0, %s258
      %s260 = sphi 0, %s258
      %s261 = sphi 0, %s260
      %s275 = sphi 0, %s261
      %s279 = sphi 0, %s279
      %s281 = sphi 0, %s279
      %s282 = sphi 0, %s281
      %s296 = sphi 0, %s282
      %s300 = sphi 0, %s300
      %s302 = sphi 0, %s300
      %s303 = sphi 0, %s302
      %s317 = sphi 0, %s303
      %s321 = sphi 0, %s321
      %s323 = sphi 0, %s321
      %s324 = sphi 0, %s323
      %s338 = sphi 0, %s324
      %s342 = sphi 0, %s342
      %s344 = sphi 0, %s342
      %s345 = sphi 0, %s344
      %s359 = sphi 0, %s345
      %s363 = sphi 0, %s363
      %s365 = sphi 0, %s363
      %s366 = sphi 0, %s365
      %s380 = sphi 0, %s366
      %s384 = sphi 0, %s384
      %s386 = sphi 0, %s384
      %s387 = sphi 0, %s386
      %s401 = sphi 0, %s387
      %s405 = sphi 0, %s405
      %s407 = sphi 0, %s405
      %s408 = sphi 0, %s407
      %s422 = sphi 0, %s408
      %s428 = sphi 0, %s430
      %s431 = sphi 0, %s428
      %s432 = sphi 0, %s431
      %s448 = sphi 0, %s432
      %s454 = sphi 0, %s456
      %s457 = sphi 0, %s454
      %s458 = sphi 0, %s457
      %s474 = sphi 0, %s458
    $region4: #{our_transformer_forward.1} parent=1 // loop_header_branch
      %33 = sbr.rel (%p31) target = $region8
    $region5: #{our_transformer_forward.1} parent=1 // loop_body
      %s35 = ssub.s32 %s30, 1
      %s36 = ssub.s32 %s30, 2
      %s37 = sadd.s32 %s30, 1
      %s38 = ssub.s32 %s30, %s37
      %p39 = scmp.eq.s32.totalorder %s38, 0
      %s41 = sadd.s32 %s40, 1
      %s42 = scalar_select %p39, %s40, %s41
      %p45 = pneg %p39
      %p46 = scmp.eq.s32.totalorder %s30, 1
      %p47 = por %p45, %p46
      %p48 = scmp.ne.s32.totalorder %s40, %s43
      %p49 = scmp.eq.s32.totalorder %s30, 0
      %p50 = por %p48, %p49
      %p51 = scmp.ne.s32.totalorder %s40, %s43
      %p52 = scmp.eq.s32.totalorder %s35, 1
      %p53 = por %p51, %p52
      %p54 = scmp.ne.s32.totalorder %s43, %s44
      %p55 = scmp.eq.s32.totalorder %s35, 0
      %p56 = por %p54, %p55
      %p57 = scmp.ne.s32.totalorder %s43, %s44
      %p58 = scmp.eq.s32.totalorder %s36, 1
      %p59 = por %p57, %p58
      %p61 = scmp.ne.s32.totalorder %s44, %s60
      %p62 = scmp.eq.s32.totalorder %s36, 0
      %p63 = por %p61, %p62
      %s64 = ssub.s32 %s30, %s37
      %p65 = scmp.eq.s32.totalorder %s64, 0
      %s67 = sadd.s32 %s66, 1
      %s68 = scalar_select %p65, %s66, %s67
      %p71 = pneg %p65
      %p72 = scmp.eq.s32.totalorder %s30, 1
      %p73 = por %p71, %p72
      %p74 = scmp.ne.s32.totalorder %s66, %s69
      %p75 = scmp.eq.s32.totalorder %s30, 0
      %p76 = por %p74, %p75
      %p77 = scmp.ne.s32.totalorder %s66, %s69
      %p78 = scmp.eq.s32.totalorder %s35, 1
      %p79 = por %p77, %p78
      %p80 = scmp.ne.s32.totalorder %s69, %s70
      %p81 = scmp.eq.s32.totalorder %s35, 0
      %p82 = por %p80, %p81
      %p83 = scmp.ne.s32.totalorder %s69, %s70
      %p84 = scmp.eq.s32.totalorder %s36, 1
      %p85 = por %p83, %p84
      %p87 = scmp.ne.s32.totalorder %s70, %s86
      %p88 = scmp.eq.s32.totalorder %s36, 0
      %p89 = por %p87, %p88
      %s91 = sadd.s32 %s90, 1
      %p94 = scmp.eq.s32.totalorder %s30, 1
      %p95 = scmp.ne.s32.totalorder %s90, %s92
      %p96 = scmp.eq.s32.totalorder %s30, 0
      %p97 = por %p95, %p96
      %p98 = scmp.ne.s32.totalorder %s90, %s92
      %p99 = scmp.eq.s32.totalorder %s35, 1
      %p100 = por %p98, %p99
      %p101 = scmp.ne.s32.totalorder %s92, %s93
      %p102 = scmp.eq.s32.totalorder %s35, 0
      %p103 = por %p101, %p102
      %p104 = scmp.ne.s32.totalorder %s92, %s93
      %p105 = scmp.eq.s32.totalorder %s36, 1
      %p106 = por %p104, %p105
      %p108 = scmp.ne.s32.totalorder %s93, %s107
      %p109 = scmp.eq.s32.totalorder %s36, 0
      %p110 = por %p108, %p109
      %s112 = sadd.s32 %s111, 1
      %p115 = scmp.eq.s32.totalorder %s30, 1
      %p116 = scmp.ne.s32.totalorder %s111, %s113
      %p117 = scmp.eq.s32.totalorder %s30, 0
      %p118 = por %p116, %p117
      %p119 = scmp.ne.s32.totalorder %s111, %s113
      %p120 = scmp.eq.s32.totalorder %s35, 1
      %p121 = por %p119, %p120
      %p122 = scmp.ne.s32.totalorder %s113, %s114
      %p123 = scmp.eq.s32.totalorder %s35, 0
      %p124 = por %p122, %p123
      %p125 = scmp.ne.s32.totalorder %s113, %s114
      %p126 = scmp.eq.s32.totalorder %s36, 1
      %p127 = por %p125, %p126
      %p129 = scmp.ne.s32.totalorder %s114, %s128
      %p130 = scmp.eq.s32.totalorder %s36, 0
      %p131 = por %p129, %p130
      %s133 = sadd.s32 %s132, 1
      %p136 = scmp.eq.s32.totalorder %s30, 1
      %p137 = scmp.ne.s32.totalorder %s132, %s134
      %p138 = scmp.eq.s32.totalorder %s30, 0
      %p139 = por %p137, %p138
      %p140 = scmp.ne.s32.totalorder %s132, %s134
      %p141 = scmp.eq.s32.totalorder %s35, 1
      %p142 = por %p140, %p141
      %p143 = scmp.ne.s32.totalorder %s134, %s135
      %p144 = scmp.eq.s32.totalorder %s35, 0
      %p145 = por %p143, %p144
      %p146 = scmp.ne.s32.totalorder %s134, %s135
      %p147 = scmp.eq.s32.totalorder %s36, 1
      %p148 = por %p146, %p147
      %p150 = scmp.ne.s32.totalorder %s135, %s149
      %p151 = scmp.eq.s32.totalorder %s36, 0
      %p152 = por %p150, %p151
      %s154 = sadd.s32 %s153, 1
      %p157 = scmp.eq.s32.totalorder %s30, 1
      %p158 = scmp.ne.s32.totalorder %s153, %s155
      %p159 = scmp.eq.s32.totalorder %s30, 0
      %p160 = por %p158, %p159
      %p161 = scmp.ne.s32.totalorder %s153, %s155
      %p162 = scmp.eq.s32.totalorder %s35, 1
      %p163 = por %p161, %p162
      %p164 = scmp.ne.s32.totalorder %s155, %s156
      %p165 = scmp.eq.s32.totalorder %s35, 0
      %p166 = por %p164, %p165
      %p167 = scmp.ne.s32.totalorder %s155, %s156
      %p168 = scmp.eq.s32.totalorder %s36, 1
      %p169 = por %p167, %p168
      %p171 = scmp.ne.s32.totalorder %s156, %s170
      %p172 = scmp.eq.s32.totalorder %s36, 0
      %p173 = por %p171, %p172
      %s175 = sadd.s32 %s174, 1
      %p178 = scmp.eq.s32.totalorder %s30, 1
      %p179 = scmp.ne.s32.totalorder %s174, %s176
      %p180 = scmp.eq.s32.totalorder %s30, 0
      %p181 = por %p179, %p180
      %p182 = scmp.ne.s32.totalorder %s174, %s176
      %p183 = scmp.eq.s32.totalorder %s35, 1
      %p184 = por %p182, %p183
      %p185 = scmp.ne.s32.totalorder %s176, %s177
      %p186 = scmp.eq.s32.totalorder %s35, 0
      %p187 = por %p185, %p186
      %p188 = scmp.ne.s32.totalorder %s176, %s177
      %p189 = scmp.eq.s32.totalorder %s36, 1
      %p190 = por %p188, %p189
      %p192 = scmp.ne.s32.totalorder %s177, %s191
      %p193 = scmp.eq.s32.totalorder %s36, 0
      %p194 = por %p192, %p193
      %s196 = sadd.s32 %s195, 1
      %p199 = scmp.eq.s32.totalorder %s30, 1
      %p200 = scmp.ne.s32.totalorder %s195, %s197
      %p201 = scmp.eq.s32.totalorder %s30, 0
      %p202 = por %p200, %p201
      %p203 = scmp.ne.s32.totalorder %s195, %s197
      %p204 = scmp.eq.s32.totalorder %s35, 1
      %p205 = por %p203, %p204
      %p206 = scmp.ne.s32.totalorder %s197, %s198
      %p207 = scmp.eq.s32.totalorder %s35, 0
      %p208 = por %p206, %p207
      %p209 = scmp.ne.s32.totalorder %s197, %s198
      %p210 = scmp.eq.s32.totalorder %s36, 1
      %p211 = por %p209, %p210
      %p213 = scmp.ne.s32.totalorder %s198, %s212
      %p214 = scmp.eq.s32.totalorder %s36, 0
      %p215 = por %p213, %p214
      %s217 = sadd.s32 %s216, 1
      %p220 = scmp.eq.s32.totalorder %s30, 1
      %p221 = scmp.ne.s32.totalorder %s216, %s218
      %p222 = scmp.eq.s32.totalorder %s30, 0
      %p223 = por %p221, %p222
      %p224 = scmp.ne.s32.totalorder %s216, %s218
      %p225 = scmp.eq.s32.totalorder %s35, 1
      %p226 = por %p224, %p225
      %p227 = scmp.ne.s32.totalorder %s218, %s219
      %p228 = scmp.eq.s32.totalorder %s35, 0
      %p229 = por %p227, %p228
      %p230 = scmp.ne.s32.totalorder %s218, %s219
      %p231 = scmp.eq.s32.totalorder %s36, 1
      %p232 = por %p230, %p231
      %p234 = scmp.ne.s32.totalorder %s219, %s233
      %p235 = scmp.eq.s32.totalorder %s36, 0
      %p236 = por %p234, %p235
      %s238 = sadd.s32 %s237, 1
      %p241 = scmp.eq.s32.totalorder %s30, 1
      %p242 = scmp.ne.s32.totalorder %s237, %s239
      %p243 = scmp.eq.s32.totalorder %s30, 0
      %p244 = por %p242, %p243
      %p245 = scmp.ne.s32.totalorder %s237, %s239
      %p246 = scmp.eq.s32.totalorder %s35, 1
      %p247 = por %p245, %p246
      %p248 = scmp.ne.s32.totalorder %s239, %s240
      %p249 = scmp.eq.s32.totalorder %s35, 0
      %p250 = por %p248, %p249
      %p251 = scmp.ne.s32.totalorder %s239, %s240
      %p252 = scmp.eq.s32.totalorder %s36, 1
      %p253 = por %p251, %p252
      %p255 = scmp.ne.s32.totalorder %s240, %s254
      %p256 = scmp.eq.s32.totalorder %s36, 0
      %p257 = por %p255, %p256
      %s259 = sadd.s32 %s258, 1
      %p262 = scmp.eq.s32.totalorder %s30, 1
      %p263 = scmp.ne.s32.totalorder %s258, %s260
      %p264 = scmp.eq.s32.totalorder %s30, 0
      %p265 = por %p263, %p264
      %p266 = scmp.ne.s32.totalorder %s258, %s260
      %p267 = scmp.eq.s32.totalorder %s35, 1
      %p268 = por %p266, %p267
      %p269 = scmp.ne.s32.totalorder %s260, %s261
      %p270 = scmp.eq.s32.totalorder %s35, 0
      %p271 = por %p269, %p270
      %p272 = scmp.ne.s32.totalorder %s260, %s261
      %p273 = scmp.eq.s32.totalorder %s36, 1
      %p274 = por %p272, %p273
      %p276 = scmp.ne.s32.totalorder %s261, %s275
      %p277 = scmp.eq.s32.totalorder %s36, 0
      %p278 = por %p276, %p277
      %s280 = sadd.s32 %s279, 1
      %p283 = scmp.eq.s32.totalorder %s30, 1
      %p284 = scmp.ne.s32.totalorder %s279, %s281
      %p285 = scmp.eq.s32.totalorder %s30, 0
      %p286 = por %p284, %p285
      %p287 = scmp.ne.s32.totalorder %s279, %s281
      %p288 = scmp.eq.s32.totalorder %s35, 1
      %p289 = por %p287, %p288
      %p290 = scmp.ne.s32.totalorder %s281, %s282
      %p291 = scmp.eq.s32.totalorder %s35, 0
      %p292 = por %p290, %p291
      %p293 = scmp.ne.s32.totalorder %s281, %s282
      %p294 = scmp.eq.s32.totalorder %s36, 1
      %p295 = por %p293, %p294
      %p297 = scmp.ne.s32.totalorder %s282, %s296
      %p298 = scmp.eq.s32.totalorder %s36, 0
      %p299 = por %p297, %p298
      %s301 = sadd.s32 %s300, 1
      %p304 = scmp.eq.s32.totalorder %s30, 1
      %p305 = scmp.ne.s32.totalorder %s300, %s302
      %p306 = scmp.eq.s32.totalorder %s30, 0
      %p307 = por %p305, %p306
      %p308 = scmp.ne.s32.totalorder %s300, %s302
      %p309 = scmp.eq.s32.totalorder %s35, 1
      %p310 = por %p308, %p309
      %p311 = scmp.ne.s32.totalorder %s302, %s303
      %p312 = scmp.eq.s32.totalorder %s35, 0
      %p313 = por %p311, %p312
      %p314 = scmp.ne.s32.totalorder %s302, %s303
      %p315 = scmp.eq.s32.totalorder %s36, 1
      %p316 = por %p314, %p315
      %p318 = scmp.ne.s32.totalorder %s303, %s317
      %p319 = scmp.eq.s32.totalorder %s36, 0
      %p320 = por %p318, %p319
      %s322 = sadd.s32 %s321, 1
      %p325 = scmp.eq.s32.totalorder %s30, 1
      %p326 = scmp.ne.s32.totalorder %s321, %s323
      %p327 = scmp.eq.s32.totalorder %s30, 0
      %p328 = por %p326, %p327
      %p329 = scmp.ne.s32.totalorder %s321, %s323
      %p330 = scmp.eq.s32.totalorder %s35, 1
      %p331 = por %p329, %p330
      %p332 = scmp.ne.s32.totalorder %s323, %s324
      %p333 = scmp.eq.s32.totalorder %s35, 0
      %p334 = por %p332, %p333
      %p335 = scmp.ne.s32.totalorder %s323, %s324
      %p336 = scmp.eq.s32.totalorder %s36, 1
      %p337 = por %p335, %p336
      %p339 = scmp.ne.s32.totalorder %s324, %s338
      %p340 = scmp.eq.s32.totalorder %s36, 0
      %p341 = por %p339, %p340
      %s343 = sadd.s32 %s342, 1
      %p346 = scmp.eq.s32.totalorder %s30, 1
      %p347 = scmp.ne.s32.totalorder %s342, %s344
      %p348 = scmp.eq.s32.totalorder %s30, 0
      %p349 = por %p347, %p348
      %p350 = scmp.ne.s32.totalorder %s342, %s344
      %p351 = scmp.eq.s32.totalorder %s35, 1
      %p352 = por %p350, %p351
      %p353 = scmp.ne.s32.totalorder %s344, %s345
      %p354 = scmp.eq.s32.totalorder %s35, 0
      %p355 = por %p353, %p354
      %p356 = scmp.ne.s32.totalorder %s344, %s345
      %p357 = scmp.eq.s32.totalorder %s36, 1
      %p358 = por %p356, %p357
      %p360 = scmp.ne.s32.totalorder %s345, %s359
      %p361 = scmp.eq.s32.totalorder %s36, 0
      %p362 = por %p360, %p361
      %s364 = sadd.s32 %s363, 1
      %p367 = scmp.eq.s32.totalorder %s30, 1
      %p368 = scmp.ne.s32.totalorder %s363, %s365
      %p369 = scmp.eq.s32.totalorder %s30, 0
      %p370 = por %p368, %p369
      %p371 = scmp.ne.s32.totalorder %s363, %s365
      %p372 = scmp.eq.s32.totalorder %s35, 1
      %p373 = por %p371, %p372
      %p374 = scmp.ne.s32.totalorder %s365, %s366
      %p375 = scmp.eq.s32.totalorder %s35, 0
      %p376 = por %p374, %p375
      %p377 = scmp.ne.s32.totalorder %s365, %s366
      %p378 = scmp.eq.s32.totalorder %s36, 1
      %p379 = por %p377, %p378
      %p381 = scmp.ne.s32.totalorder %s366, %s380
      %p382 = scmp.eq.s32.totalorder %s36, 0
      %p383 = por %p381, %p382
      %s385 = sadd.s32 %s384, 1
      %p388 = scmp.eq.s32.totalorder %s30, 1
      %p389 = scmp.ne.s32.totalorder %s384, %s386
      %p390 = scmp.eq.s32.totalorder %s30, 0
      %p391 = por %p389, %p390
      %p392 = scmp.ne.s32.totalorder %s384, %s386
      %p393 = scmp.eq.s32.totalorder %s35, 1
      %p394 = por %p392, %p393
      %p395 = scmp.ne.s32.totalorder %s386, %s387
      %p396 = scmp.eq.s32.totalorder %s35, 0
      %p397 = por %p395, %p396
      %p398 = scmp.ne.s32.totalorder %s386, %s387
      %p399 = scmp.eq.s32.totalorder %s36, 1
      %p400 = por %p398, %p399
      %p402 = scmp.ne.s32.totalorder %s387, %s401
      %p403 = scmp.eq.s32.totalorder %s36, 0
      %p404 = por %p402, %p403
      %s406 = sadd.s32 %s405, 1
      %p409 = scmp.eq.s32.totalorder %s30, 1
      %p410 = scmp.ne.s32.totalorder %s405, %s407
      %p411 = scmp.eq.s32.totalorder %s30, 0
      %p412 = por %p410, %p411
      %p413 = scmp.ne.s32.totalorder %s405, %s407
      %p414 = scmp.eq.s32.totalorder %s35, 1
      %p415 = por %p413, %p414
      %p416 = scmp.ne.s32.totalorder %s407, %s408
      %p417 = scmp.eq.s32.totalorder %s35, 0
      %p418 = por %p416, %p417
      %p419 = scmp.ne.s32.totalorder %s407, %s408
      %p420 = scmp.eq.s32.totalorder %s36, 1
      %p421 = por %p419, %p420
      %p423 = scmp.ne.s32.totalorder %s408, %s422
      %p424 = scmp.eq.s32.totalorder %s36, 0
      %p425 = por %p423, %p424
      %s426 = ssub.s32 %s30, %s37
      %p427 = scmp.eq.s32.totalorder %s426, 0
      %s429 = sadd.s32 %s428, 1
      %s430 = scalar_select %p427, %s428, %s429
      %p433 = pneg %p427
      %p434 = scmp.eq.s32.totalorder %s30, 1
      %p435 = por %p433, %p434
      %p436 = scmp.ne.s32.totalorder %s428, %s431
      %p437 = scmp.eq.s32.totalorder %s30, 0
      %p438 = por %p436, %p437
      %p439 = scmp.ne.s32.totalorder %s428, %s431
      %p440 = scmp.eq.s32.totalorder %s35, 1
      %p441 = por %p439, %p440
      %p442 = scmp.ne.s32.totalorder %s431, %s432
      %p443 = scmp.eq.s32.totalorder %s35, 0
      %p444 = por %p442, %p443
      %p445 = scmp.ne.s32.totalorder %s431, %s432
      %p446 = scmp.eq.s32.totalorder %s36, 1
      %p447 = por %p445, %p446
      %p449 = scmp.ne.s32.totalorder %s432, %s448
      %p450 = scmp.eq.s32.totalorder %s36, 0
      %p451 = por %p449, %p450
      %s452 = ssub.s32 %s30, %s37
      %p453 = scmp.eq.s32.totalorder %s452, 0
      %s455 = sadd.s32 %s454, 1
      %s456 = scalar_select %p453, %s454, %s455
      %p459 = pneg %p453
      %p460 = scmp.eq.s32.totalorder %s30, 1
      %p461 = por %p459, %p460
      %p462 = scmp.ne.s32.totalorder %s454, %s457
      %p463 = scmp.eq.s32.totalorder %s30, 0
      %p464 = por %p462, %p463
      %p465 = scmp.ne.s32.totalorder %s454, %s457
      %p466 = scmp.eq.s32.totalorder %s35, 1
      %p467 = por %p465, %p466
      %p468 = scmp.ne.s32.totalorder %s457, %s458
      %p469 = scmp.eq.s32.totalorder %s35, 0
      %p470 = por %p468, %p469
      %p471 = scmp.ne.s32.totalorder %s457, %s458
      %p472 = scmp.eq.s32.totalorder %s36, 1
      %p473 = por %p471, %p472
      %p475 = scmp.ne.s32.totalorder %s458, %s474
      %p476 = scmp.eq.s32.totalorder %s36, 0
      %p477 = por %p475, %p476
      %p478 = scmp.le.s32.totalorder 1, %s30
      %p479 = scmp.lt.s32.totalorder %s30, 3
      %p480 = pnand %p478, %p479
      %p481 = pneg %p480
      // Predicated region
      $region9: #{our_transformer_forward.1} parent=5 // pred_check
        _
      $region10: #{our_transformer_forward.1} parent=5 // pred_check_branch
        %483 = sbr.rel (%p480) target = $region12
      $region11: #{our_transformer_forward.1} parent=5 // pred_region
        %s484 = ssub.s32 %s30, 1
        // Predicated region
        $region13: #{our_transformer_forward.1} parent=11 // pred_check
          %p485 = pneg %p103
        $region14: #{our_transformer_forward.1} parent=11 // pred_check_branch
          %487 = sbr.rel (%p485) target = $region16
        $region15: #{our_transformer_forward.1} parent=11 // pred_region
          _
        $region16: #{our_transformer_forward.1} parent=11 // pred_fallthru
          _
        // Predicated region
        $region17: #{our_transformer_forward.1} parent=11 // pred_check
          %p488 = pneg %p124
        $region18: #{our_transformer_forward.1} parent=11 // pred_check_branch
          %490 = sbr.rel (%p488) target = $region20
        $region19: #{our_transformer_forward.1} parent=11 // pred_region
          _
        $region20: #{our_transformer_forward.1} parent=11 // pred_fallthru
          _
        // Predicated region
        $region21: #{our_transformer_forward.1} parent=11 // pred_check
          %p491 = pneg %p145
        $region22: #{our_transformer_forward.1} parent=11 // pred_check_branch
          %493 = sbr.rel (%p491) target = $region24
        $region23: #{our_transformer_forward.1} parent=11 // pred_region
          %s495 = ssub.s32 1024, 1024
          %496 = vsyncadd [#allocation4], %s495
          %s497 = sshll.u32 [#allocation3], 4
          %s498 = int_to_ptr.vmem [resolvable:$true] %s497
          %503 = dma.hbm_to_vmem [thread:$0]  %s4, 1024, %s498, [#allocation4], 64, 64, 4
        $region24: #{our_transformer_forward.1} parent=11 // pred_fallthru
          _
        // Predicated region
        $region25: #{our_transformer_forward.1} parent=11 // pred_check
          %p504 = pneg %p166
        $region26: #{our_transformer_forward.1} parent=11 // pred_check_branch
          %506 = sbr.rel (%p504) target = $region28
        $region27: #{our_transformer_forward.1} parent=11 // pred_region
          _
        $region28: #{our_transformer_forward.1} parent=11 // pred_fallthru
          _
        // Predicated region
        $region29: #{our_transformer_forward.1} parent=11 // pred_check
          %p507 = pneg %p187
        $region30: #{our_transformer_forward.1} parent=11 // pred_check_branch
          %509 = sbr.rel (%p507) target = $region32
        $region31: #{our_transformer_forward.1} parent=11 // pred_region
          _
        $region32: #{our_transformer_forward.1} parent=11 // pred_fallthru
          _
        // Predicated region
        $region33: #{our_transformer_forward.1} parent=11 // pred_check
          %p510 = pneg %p208
        $region34: #{our_transformer_forward.1} parent=11 // pred_check_branch
          %512 = sbr.rel (%p510) target = $region36
        $region35: #{our_transformer_forward.1} parent=11 // pred_region
          _
        $region36: #{our_transformer_forward.1} parent=11 // pred_fallthru
          _
        // Predicated region
        $region37: #{our_transformer_forward.1} parent=11 // pred_check
          %p513 = pneg %p229
        $region38: #{our_transformer_forward.1} parent=11 // pred_check_branch
          %515 = sbr.rel (%p513) target = $region40
        $region39: #{our_transformer_forward.1} parent=11 // pred_region
          %s517 = ssub.s32 2048, 2048
          %518 = vsyncadd [#allocation6], %s517
          %s519 = sshll.u32 [#allocation5], 4
          %s520 = int_to_ptr.vmem [resolvable:$true] %s519
          %525 = dma.hbm_to_vmem [thread:$0]  %s8, 2048, %s520, [#allocation6], 128, 128, 8
        $region40: #{our_transformer_forward.1} parent=11 // pred_fallthru
          _
        // Predicated region
        $region41: #{our_transformer_forward.1} parent=11 // pred_check
          %p526 = pneg %p250
        $region42: #{our_transformer_forward.1} parent=11 // pred_check_branch
          %528 = sbr.rel (%p526) target = $region44
        $region43: #{our_transformer_forward.1} parent=11 // pred_region
          _
        $region44: #{our_transformer_forward.1} parent=11 // pred_fallthru
          _
        // Predicated region
        $region45: #{our_transformer_forward.1} parent=11 // pred_check
          %p529 = pneg %p271
        $region46: #{our_transformer_forward.1} parent=11 // pred_check_branch
          %531 = sbr.rel (%p529) target = $region48
        $region47: #{our_transformer_forward.1} parent=11 // pred_region
          %s533 = ssub.s32 2048, 2048
          %534 = vsyncadd [#allocation6], %s533
          %s535 = sshll.u32 [#allocation7], 4
          %s536 = int_to_ptr.vmem [resolvable:$true] %s535
          %541 = dma.hbm_to_vmem [thread:$0]  %s10, 2048, %s536, [#allocation6], 64, 64, 4
        $region48: #{our_transformer_forward.1} parent=11 // pred_fallthru
          _
        // Predicated region
        $region49: #{our_transformer_forward.1} parent=11 // pred_check
          %p542 = pneg %p292
        $region50: #{our_transformer_forward.1} parent=11 // pred_check_branch
          %544 = sbr.rel (%p542) target = $region52
        $region51: #{our_transformer_forward.1} parent=11 // pred_region
          _
        $region52: #{our_transformer_forward.1} parent=11 // pred_fallthru
          _
        // Predicated region
        $region53: #{our_transformer_forward.1} parent=11 // pred_check
          %p545 = pneg %p313
        $region54: #{our_transformer_forward.1} parent=11 // pred_check_branch
          %547 = sbr.rel (%p545) target = $region56
        $region55: #{our_transformer_forward.1} parent=11 // pred_region
          _
        $region56: #{our_transformer_forward.1} parent=11 // pred_fallthru
          _
        // Predicated region
        $region57: #{our_transformer_forward.1} parent=11 // pred_check
          %p548 = pneg %p334
        $region58: #{our_transformer_forward.1} parent=11 // pred_check_branch
          %550 = sbr.rel (%p548) target = $region60
        $region59: #{our_transformer_forward.1} parent=11 // pred_region
          _
        $region60: #{our_transformer_forward.1} parent=11 // pred_fallthru
          _
        // Predicated region
        $region61: #{our_transformer_forward.1} parent=11 // pred_check
          %p551 = pneg %p355
        $region62: #{our_transformer_forward.1} parent=11 // pred_check_branch
          %553 = sbr.rel (%p551) target = $region64
        $region63: #{our_transformer_forward.1} parent=11 // pred_region
          _
        $region64: #{our_transformer_forward.1} parent=11 // pred_fallthru
          _
        // Predicated region
        $region65: #{our_transformer_forward.1} parent=11 // pred_check
          %p554 = pneg %p376
        $region66: #{our_transformer_forward.1} parent=11 // pred_check_branch
          %556 = sbr.rel (%p554) target = $region68
        $region67: #{our_transformer_forward.1} parent=11 // pred_region
          _
        $region68: #{our_transformer_forward.1} parent=11 // pred_fallthru
          _
        // Predicated region
        $region69: #{our_transformer_forward.1} parent=11 // pred_check
          %p557 = pneg %p397
        $region70: #{our_transformer_forward.1} parent=11 // pred_check_branch
          %559 = sbr.rel (%p557) target = $region72
        $region71: #{our_transformer_forward.1} parent=11 // pred_region
          _
        $region72: #{our_transformer_forward.1} parent=11 // pred_fallthru
          _
        // Predicated region
        $region73: #{our_transformer_forward.1} parent=11 // pred_check
          %p560 = pneg %p418
        $region74: #{our_transformer_forward.1} parent=11 // pred_check_branch
          %562 = sbr.rel (%p560) target = $region76
        $region75: #{our_transformer_forward.1} parent=11 // pred_region
          _
        $region76: #{our_transformer_forward.1} parent=11 // pred_fallthru
          _
      $region12: #{our_transformer_forward.1} parent=5 // pred_fallthru
        _
      %p563 = scmp.lt.s32.totalorder %s30, 2
      // Predicated region
      $region77: #{our_transformer_forward.1} parent=5 // pred_check
        %p564 = pneg %p563
      $region78: #{our_transformer_forward.1} parent=5 // pred_check_branch
        %566 = sbr.rel (%p564) target = $region80
      $region79: #{our_transformer_forward.1} parent=5 // pred_region
        // Predicated region
        $region81: #{our_transformer_forward.1} parent=79 // pred_check
          %p567 = pneg %p50
        $region82: #{our_transformer_forward.1} parent=79 // pred_check_branch
          %569 = sbr.rel (%p567) target = $region84
        $region83: #{our_transformer_forward.1} parent=79 // pred_region
          %p570 = scmp.lt.s32.totalorder %s30, 1
          %s571 = scalar_select %p570, %s30, 1
          %s572 = smul.addr %s571, 2
          %s573 = smul.addr %s572, 4
          %s574 = scalar_lea.vmem %s0, %s573
        $region84: #{our_transformer_forward.1} parent=79 // pred_fallthru
          _
        // Predicated region
        $region85: #{our_transformer_forward.1} parent=79 // pred_check
          %p575 = pneg %p76
        $region86: #{our_transformer_forward.1} parent=79 // pred_check_branch
          %577 = sbr.rel (%p575) target = $region88
        $region87: #{our_transformer_forward.1} parent=79 // pred_region
          %p578 = scmp.lt.s32.totalorder %s30, 1
          %s579 = scalar_select %p578, %s30, 1
          %s580 = scalar_lea.vmem %s1, %s579
        $region88: #{our_transformer_forward.1} parent=79 // pred_fallthru
          _
      $region80: #{our_transformer_forward.1} parent=5 // pred_fallthru
        _
      %p581 = scmp.le.s32.totalorder 1, %s30
      %p582 = scmp.lt.s32.totalorder %s30, 3
      %p583 = pnand %p581, %p582
      %p584 = pneg %p583
      // Predicated region
      $region89: #{our_transformer_forward.1} parent=5 // pred_check
        _
      $region90: #{our_transformer_forward.1} parent=5 // pred_check_branch
        %586 = sbr.rel (%p583) target = $region92
      $region91: #{our_transformer_forward.1} parent=5 // pred_region
        %s587 = ssub.s32 %s30, 1
        // Predicated region
        $region93: #{our_transformer_forward.1} parent=91 // pred_check
          %p588 = pneg %p145
        $region94: #{our_transformer_forward.1} parent=91 // pred_check_branch
          %590 = sbr.rel (%p588) target = $region96
        $region95: #{our_transformer_forward.1} parent=91 // pred_region
          %591 = dma.done [#allocation4], 1024
        $region96: #{our_transformer_forward.1} parent=91 // pred_fallthru
          _
        // Predicated region
        $region97: #{our_transformer_forward.1} parent=91 // pred_check
          %p592 = pneg %p229
        $region98: #{our_transformer_forward.1} parent=91 // pred_check_branch
          %594 = sbr.rel (%p592) target = $region100
        $region99: #{our_transformer_forward.1} parent=91 // pred_region
          %595 = dma.done [#allocation6], 2048
        $region100: #{our_transformer_forward.1} parent=91 // pred_fallthru
          _
        // Predicated region
        $region101: #{our_transformer_forward.1} parent=91 // pred_check
          %p596 = pneg %p271
        $region102: #{our_transformer_forward.1} parent=91 // pred_check_branch
          %598 = sbr.rel (%p596) target = $region104
        $region103: #{our_transformer_forward.1} parent=91 // pred_region
          %599 = dma.done [#allocation6], 2048
        $region104: #{our_transformer_forward.1} parent=91 // pred_fallthru
          _
        %p600 = scmp.lt.s32.totalorder %s35, 1
        %s601 = scalar_select %p600, %s35, 1
        %s602 = smul.addr %s601, 2
        %s603 = smul.addr %s602, 4
        %s604 = scalar_lea.vmem %s0, %s603
        %p605 = pneg %p56
        %p606 = pneg %p53
        %p607 = scmp.lt.s32.totalorder %s35, 1
        %s608 = scalar_select %p607, %s35, 1
        %s609 = scalar_lea.vmem %s1, %s608
        %p610 = pneg %p82
        %p611 = pneg %p79
        %p612 = pneg %p103
        %p613 = pneg %p100
        %p614 = pneg %p124
        %p615 = pneg %p121
        %p616 = pneg %p145
        %p617 = pneg %p142
        %p618 = pneg %p166
        %p619 = pneg %p163
        %p620 = pneg %p187
        %p621 = pneg %p184
        %p622 = pneg %p208
        %p623 = pneg %p205
        %p624 = pneg %p229
        %p625 = pneg %p226
        %p626 = pneg %p250
        %p627 = pneg %p247
        %p628 = pneg %p271
        %p629 = pneg %p268
        %p630 = pneg %p292
        %p631 = pneg %p289
        %p632 = pneg %p313
        %p633 = pneg %p310
        %p634 = pneg %p334
        %p635 = pneg %p331
        %p636 = pneg %p355
        %p637 = pneg %p352
        %p638 = pneg %p376
        %p639 = pneg %p373
        %p640 = pneg %p397
        %p641 = pneg %p394
        %p642 = pneg %p418
        %p643 = pneg %p415
        %p644 = pneg %p444
        %p645 = pneg %p441
        %p646 = scmp.lt.s32.totalorder %s35, 1
        %s647 = scalar_select %p646, %s35, 1
        %s648 = smul.addr %s647, 2
        %s649 = smul.addr %s648, 4
        %s650 = scalar_lea.vmem %s18, %s649
        %p651 = pneg %p470
        %p652 = pneg %p467
        %p653 = scmp.lt.s32.totalorder %s35, 1
        %s654 = scalar_select %p653, %s35, 1
        %s655 = scalar_lea.vmem %s19, %s654
        %p656 = scmp.lt.s32.totalorder %s35, 1
        %s657 = scalar_select %p656, %s35, 1
        %s658 = smul.addr %s657, 2
        %s659 = smul.addr %s658, 4
        %s660 = scalar_lea.vmem %s0, %s659
        %p661 = scmp.lt.s32.totalorder %s35, 1
        %s662 = scalar_select %p661, %s35, 1
        %s663 = scalar_lea.vmem %s1, %s662
        %p664 = scmp.lt.s32.totalorder %s35, 1
        %s665 = scalar_select %p664, %s35, 1
        %s666 = smul.addr %s665, 2
        %s667 = smul.addr %s666, 4
        %s668 = scalar_lea.vmem %s18, %s667
        %p669 = scmp.lt.s32.totalorder %s35, 1
        %s670 = scalar_select %p669, %s35, 1
        %s671 = scalar_lea.vmem %s19, %s670
        %v673 = vld [vmem:[%s660] sm:$0xf]
        %v674 = vld [vmem:[%s660 + $0x4] sm:$0xf]
        %v675 = vunpack.c.l.bf16 %v673
        %v676 = vunpack.c.l.bf16 %v674
        %v677 = vld [vmem:[%s663] sm:$0x1]
        %v678 = vld [vmem:[%s2] sm:$0xff]
        %v679 = vld [vmem:[%s2 + $0x8] sm:$0xf]
        %v680 = vld [vmem:[%s2 + $0xc] sm:$0xff]
        %v681 = vld [vmem:[%s2 + $0x14] sm:$0xf]
        %v682 = vld [vmem:[%s2 + $0x18] sm:$0xff]
        %v683 = vld [vmem:[%s2 + $0x20] sm:$0xf]
        %v684 = vld [vmem:[%s2 + $0x24] sm:$0xff]
        %v685 = vld [vmem:[%s2 + $0x2c] sm:$0xf]
        %v686 = vld [vmem:[%s2 + $0x30] sm:$0xff]
        %v687 = vld [vmem:[%s2 + $0x38] sm:$0xf]
        %v688 = vld [vmem:[%s2 + $0x3c] sm:$0xff]
        %v689 = vld [vmem:[%s2 + $0x44] sm:$0xf]
        %v690 = vld [vmem:[%s2 + $0x48] sm:$0xff]
        %v691 = vld [vmem:[%s2 + $0x50] sm:$0xf]
        %v692 = vld [vmem:[%s2 + $0x54] sm:$0xff]
        %v693 = vld [vmem:[%s2 + $0x5c] sm:$0xf]
        %v694 = vld [vmem:[%s2 + $0x60] sm:$0xff]
        %v695 = vld [vmem:[%s2 + $0x68] sm:$0xf]
        %v696 = vld [vmem:[%s2 + $0x6c] sm:$0xff]
        %v697 = vld [vmem:[%s2 + $0x74] sm:$0xf]
        %v698 = vld [vmem:[%s2 + $0x78] sm:$0xff]
        %v699 = vld [vmem:[%s2 + $0x80] sm:$0xf]
        %v700 = vld [vmem:[%s2 + $0x84] sm:$0xff]
        %v701 = vld [vmem:[%s2 + $0x8c] sm:$0xf]
        %v702 = vld [vmem:[%s2 + $0x90] sm:$0xff]
        %v703 = vld [vmem:[%s2 + $0x98] sm:$0xf]
        %v704 = vld [vmem:[%s2 + $0x9c] sm:$0xff]
        %v705 = vld [vmem:[%s2 + $0xa4] sm:$0xf]
        %v706 = vld [vmem:[%s2 + $0xa8] sm:$0xff]
        %v707 = vld [vmem:[%s2 + $0xb0] sm:$0xf]
        %v708 = vld [vmem:[%s2 + $0xb4] sm:$0xff]
        %v709 = vld [vmem:[%s2 + $0xbc] sm:$0xf]
        %v710 = vld [vmem:[%s3] sm:$0x7]
        %v712 = vlaneseq
        %v713 = vshrl.u32 %v712, 7
        %v714 = vsub.s32 0, %v713
        %v715 = vrot.slane %v710, %v714
        %v716 = vlaneseq
        %v717 = vshrl.u32 %v716, 7
        %v718 = vsub.s32 1, %v717
        %v719 = vrot.slane %v710, %v718
        %v720 = vlaneseq
        %v721 = vshrl.u32 %v720, 7
        %v722 = vsub.s32 2, %v721
        %v723 = vrot.slane %v710, %v722
        %v729 = vunpack.c.l.b16 %v673
        %v730 = vunpack.c.l.b16 %v674
        %v731 = vpack.c.b16 %v730, %v729
        %v765 = vunpack.c.l.b16 %v678
        %v766 = vunpack.c.h.b16 %v678
        %v767 = vunpack.c.l.b16 %v679
        %v768 = vunpack.c.l.b16 %v680
        %v769 = vunpack.c.h.b16 %v680
        %v770 = vunpack.c.l.b16 %v681
        %v771 = vunpack.c.l.b16 %v682
        %v772 = vunpack.c.h.b16 %v682
        %v773 = vunpack.c.l.b16 %v683
        %v774 = vunpack.c.l.b16 %v684
        %v775 = vunpack.c.h.b16 %v684
        %v776 = vunpack.c.l.b16 %v685
        %v777 = vunpack.c.l.b16 %v686
        %v778 = vunpack.c.h.b16 %v686
        %v779 = vunpack.c.l.b16 %v687
        %v780 = vunpack.c.l.b16 %v688
        %v781 = vunpack.c.h.b16 %v688
        %v782 = vunpack.c.l.b16 %v689
        %v783 = vunpack.c.l.b16 %v690
        %v784 = vunpack.c.h.b16 %v690
        %v785 = vunpack.c.l.b16 %v691
        %v786 = vunpack.c.l.b16 %v692
        %v787 = vunpack.c.h.b16 %v692
        %v788 = vunpack.c.l.b16 %v693
        %v789 = vunpack.c.l.b16 %v694
        %v790 = vunpack.c.h.b16 %v694
        %v791 = vunpack.c.l.b16 %v695
        %v792 = vunpack.c.l.b16 %v696
        %v793 = vunpack.c.h.b16 %v696
        %v794 = vunpack.c.l.b16 %v697
        %v795 = vunpack.c.l.b16 %v698
        %v796 = vunpack.c.h.b16 %v698
        %v797 = vunpack.c.l.b16 %v699
        %v798 = vunpack.c.l.b16 %v700
        %v799 = vunpack.c.h.b16 %v700
        %v800 = vunpack.c.l.b16 %v701
        %v801 = vunpack.c.l.b16 %v702
        %v802 = vunpack.c.h.b16 %v702
        %v803 = vunpack.c.l.b16 %v703
        %v804 = vunpack.c.l.b16 %v704
        %v805 = vunpack.c.h.b16 %v704
        %v806 = vunpack.c.l.b16 %v705
        %v807 = vunpack.c.l.b16 %v706
        %v808 = vunpack.c.h.b16 %v706
        %v809 = vunpack.c.l.b16 %v707
        %v810 = vunpack.c.l.b16 %v708
        %v811 = vunpack.c.h.b16 %v708
        %v812 = vunpack.c.l.b16 %v709
        %v813 = vpack.c.b16 %v768, %v765
        %v814 = vpack.c.b16 %v769, %v766
        %v815 = vpack.c.b16 %v770, %v767
        %v816 = vpack.c.b16 %v774, %v771
        %v817 = vpack.c.b16 %v775, %v772
        %v818 = vpack.c.b16 %v776, %v773
        %v819 = vpack.c.b16 %v780, %v777
        %v820 = vpack.c.b16 %v781, %v778
        %v821 = vpack.c.b16 %v782, %v779
        %v822 = vpack.c.b16 %v786, %v783
        %v823 = vpack.c.b16 %v787, %v784
        %v824 = vpack.c.b16 %v788, %v785
        %v825 = vpack.c.b16 %v792, %v789
        %v826 = vpack.c.b16 %v793, %v790
        %v827 = vpack.c.b16 %v794, %v791
        %v828 = vpack.c.b16 %v798, %v795
        %v829 = vpack.c.b16 %v799, %v796
        %v830 = vpack.c.b16 %v800, %v797
        %v831 = vpack.c.b16 %v804, %v801
        %v832 = vpack.c.b16 %v805, %v802
        %v833 = vpack.c.b16 %v806, %v803
        %v834 = vpack.c.b16 %v810, %v807
        %v835 = vpack.c.b16 %v811, %v808
        %v836 = vpack.c.b16 %v812, %v809
        %861 = vmatprep.subr.bf16.mxu0 %v814
        %862 = vmatpush1.bf16.msra.mxu0 %v813
        %863 = vmatprep.subr.bf16.mxu0 %v817
        %864 = vmatpush1.bf16.msra.mxu0 %v816
        %865 = vmatprep.subr.bf16.mxu0 %v820
        %866 = vmatpush1.bf16.msra.mxu0 %v819
        %867 = vmatprep.subr.bf16.mxu0 %v823
        %868 = vmatpush1.bf16.msra.mxu0 %v822
        %869 = vmatprep.subr.bf16.mxu0 %v826
        %870 = vmatpush1.bf16.msra.mxu0 %v825
        %871 = vmatprep.subr.bf16.mxu0 %v829
        %872 = vmatpush1.bf16.msra.mxu0 %v828
        %873 = vmatprep.subr.bf16.mxu0 %v832
        %874 = vmatpush1.bf16.msra.mxu0 %v831
        %875 = vmatprep.subr.bf16.mxu0 %v835
        %876 = vmatpush1.bf16.msra.mxu0 %v834
        %877 = vmatprep.subr.bf16.mxu0 0
        %878 = vmatpush1.bf16.msra.mxu0 0
        %879 = vmatprep.subr.bf16.mxu0 0
        %880 = vmatpush1.bf16.msra.mxu0 0
        %881 = vmatprep.subr.bf16.mxu0 0
        %882 = vmatpush1.bf16.msra.mxu0 0
        %883 = vmatprep.subr.bf16.mxu0 0
        %884 = vmatpush1.bf16.msra.mxu0 0
        %885 = vmatprep.subr.bf16.mxu0 0
        %886 = vmatpush1.bf16.msra.mxu0 0
        %887 = vmatprep.subr.bf16.mxu0 0
        %888 = vmatpush1.bf16.msra.mxu0 0
        %889 = vmatprep.subr.bf16.mxu0 0
        %890 = vmatpush1.bf16.msra.mxu0 0
        %891 = vmatprep.subr.bf16.mxu0 0
        %892 = vmatpush1.bf16.msra.mxu0 0
        %893 = vmatprep.mubr.bf16.mxu0 0
        %894 = vmatmul.mubr.bf16.gmra.mrb[0].mxu0 %v731
        %v895 = vpop.f32.mrb[0].mxu0
        %v896 = vadd.f32 %v715, %v895
        %v897 = vpop.f32.mrb[0].mxu0
        %v898 = vadd.f32 %v719, %v897
        %v899 = vpop.f32.mrb[0].mxu0
        %v900 = vadd.f32 %v715, %v899
        %v901 = vpop.f32.mrb[0].mxu0
        %v902 = vadd.f32 %v719, %v901
        %903 = vdwg.mxu0
        %904 = vmatprep.subr.bf16.mxu0 0
        %905 = vmatpush1.bf16.msra.mxu0 %v815
        %906 = vmatprep.subr.bf16.mxu0 0
        %907 = vmatpush1.bf16.msra.mxu0 %v818
        %908 = vmatprep.subr.bf16.mxu0 0
        %909 = vmatpush1.bf16.msra.mxu0 %v821
        %910 = vmatprep.subr.bf16.mxu0 0
        %911 = vmatpush1.bf16.msra.mxu0 %v824
        %912 = vmatprep.subr.bf16.mxu0 0
        %913 = vmatpush1.bf16.msra.mxu0 %v827
        %914 = vmatprep.subr.bf16.mxu0 0
        %915 = vmatpush1.bf16.msra.mxu0 %v830
        %916 = vmatprep.subr.bf16.mxu0 0
        %917 = vmatpush1.bf16.msra.mxu0 %v833
        %918 = vmatprep.subr.bf16.mxu0 0
        %919 = vmatpush1.bf16.msra.mxu0 %v836
        %920 = vmatprep.subr.bf16.mxu0 0
        %921 = vmatpush1.bf16.msra.mxu0 0
        %922 = vmatprep.subr.bf16.mxu0 0
        %923 = vmatpush1.bf16.msra.mxu0 0
        %924 = vmatprep.subr.bf16.mxu0 0
        %925 = vmatpush1.bf16.msra.mxu0 0
        %926 = vmatprep.subr.bf16.mxu0 0
        %927 = vmatpush1.bf16.msra.mxu0 0
        %928 = vmatprep.subr.bf16.mxu0 0
        %929 = vmatpush1.bf16.msra.mxu0 0
        %930 = vmatprep.subr.bf16.mxu0 0
        %931 = vmatpush1.bf16.msra.mxu0 0
        %932 = vmatprep.subr.bf16.mxu0 0
        %933 = vmatpush1.bf16.msra.mxu0 0
        %934 = vmatprep.subr.bf16.mxu0 0
        %935 = vmatpush1.bf16.msra.mxu0 0
        %936 = vmatprep.mubr.bf16.mxu0 0
        %937 = vmatmul.mubr.bf16.gmra.mrb[0].mxu0 %v731
        %v938 = vpop.f32.mrb[0].mxu0
        %v939 = vadd.f32 %v723, %v938
        %v940 = vpop.f32.mrb[0].mxu0
        %v941 = vpop.f32.mrb[0].mxu0
        %v942 = vadd.f32 %v723, %v941
        %v943 = vpop.f32.mrb[0].mxu0
        %944 = vdwg.mxu0
        %v945 = vpack.c.bf16 %v900, %v896
        %v946 = vpack.c.bf16 %v902, %v898
        %v947 = vpack.c.bf16 %v942, %v939
        %v949 = vlaneseq
        %v950 = vshrl.u32 %v949, 7
        %v951 = vsub.s32 0, %v950
        %v952 = vrot.slane %v677, %v951
        %954 = vmatprep.subr.bf16.mxu0 0
        %955 = vmatpush1.bf16.xpose.msra.mxu0 %v946
        %956 = vmatprep.subr.bf16.mxu0 0
        %957 = vmatpush1.bf16.xpose.msra.mxu0 0
        %958 = vmatprep.subr.bf16.mxu0 0
        %959 = vmatpush1.bf16.xpose.msra.mxu0 0
        %960 = vmatprep.subr.bf16.mxu0 0
        %961 = vmatpush1.bf16.xpose.msra.mxu0 0
        %962 = vmatprep.subr.bf16.mxu0 0
        %963 = vmatpush1.bf16.xpose.msra.mxu0 0
        %964 = vmatprep.subr.bf16.mxu0 0
        %965 = vmatpush1.bf16.xpose.msra.mxu0 0
        %966 = vmatprep.subr.bf16.mxu0 0
        %967 = vmatpush1.bf16.xpose.msra.mxu0 0
        %968 = vmatprep.subr.bf16.mxu0 0
        %969 = vmatpush1.bf16.xpose.msra.mxu0 0
        %970 = vmatprep.subr.bf16.mxu0 0
        %971 = vmatpush1.bf16.xpose.msra.mxu0 0
        %972 = vmatprep.subr.bf16.mxu0 0
        %973 = vmatpush1.bf16.xpose.msra.mxu0 0
        %974 = vmatprep.subr.bf16.mxu0 0
        %975 = vmatpush1.bf16.xpose.msra.mxu0 0
        %976 = vmatprep.subr.bf16.mxu0 0
        %977 = vmatpush1.bf16.xpose.msra.mxu0 0
        %978 = vmatprep.subr.bf16.mxu0 0
        %979 = vmatpush1.bf16.xpose.msra.mxu0 0
        %980 = vmatprep.subr.bf16.mxu0 0
        %981 = vmatpush1.bf16.xpose.msra.mxu0 0
        %982 = vmatprep.subr.bf16.mxu0 0
        %983 = vmatpush1.bf16.xpose.msra.mxu0 0
        %984 = vmatprep.subr.bf16.mxu0 0
        %985 = vmatpush1.bf16.xpose.msra.mxu0 0
        %986 = vmatprep.mubr.bf16.mxu0 0
        %987 = vmatmul.mubr.bf16.gmra.mrb[0].mxu0 %v945
        %v988 = vpop.f32.mrb[0].mxu0
        %v989 = vadd.f32 %v952, %v988
        %v990 = vpop.f32.mrb[0].mxu0
        %v991 = vpop.f32.mrb[0].mxu0
        %v992 = vadd.f32 %v952, %v991
        %v993 = vpop.f32.mrb[0].mxu0
        %994 = vdwg.mxu0
        %vm995 = vcmask 130048
        %v996 = vsel %vm995, %v989, -inf
        %997 = vmax.xlane.f32.xlu0 %v996
        %v998 = vpop.xlane.xlu0 %997
        %v999 = vsel %vm995, %v992, -inf
        %1000 = vmax.xlane.f32.xlu0 %v999
        %v1001 = vpop.xlane.xlu0 %1000
        %v1002 = vsub.f32 %v989, %v998
        %v1003 = vsub.f32 %v992, %v1001
        %v1004 = vmul.f32 %v1002, 1.442695
        %v1005 = vpow.pop %v1004
        %v1006 = vmul.f32 %v1003, 1.442695
        %v1007 = vpow.pop %v1006
        %v1008 = vsel %vm995, %v1005, 0.0
        %1009 = vadd.xlane.f32.xlu0 %v1008
        %v1010 = vpop.xlane.xlu0 %1009
        %v1011 = vsel %vm995, %v1007, 0.0
        %1012 = vadd.xlane.f32.xlu0 %v1011
        %v1013 = vpop.xlane.xlu0 %1012
        %v1014 = vrcp.pop %v1010
        %v1015 = vrcp.pop %v1013
        %v1016 = vmul.f32 %v1005, %v1014
        %v1017 = vmul.f32 %v1007, %v1015
        %v1018 = vpack.c.bf16 %v1017, %v1016
        %v1020 = vsel %vm995, %v1018, 0
        %1022 = vmatprep.subr.bf16.mxu0 0
        %1023 = vmatpush1.bf16.msra.mxu0 %v947
        %1024 = vmatprep.subr.bf16.mxu0 0
        %1025 = vmatpush1.bf16.msra.mxu0 0
        %1026 = vmatprep.subr.bf16.mxu0 0
        %1027 = vmatpush1.bf16.msra.mxu0 0
        %1028 = vmatprep.subr.bf16.mxu0 0
        %1029 = vmatpush1.bf16.msra.mxu0 0
        %1030 = vmatprep.subr.bf16.mxu0 0
        %1031 = vmatpush1.bf16.msra.mxu0 0
        %1032 = vmatprep.subr.bf16.mxu0 0
        %1033 = vmatpush1.bf16.msra.mxu0 0
        %1034 = vmatprep.subr.bf16.mxu0 0
        %1035 = vmatpush1.bf16.msra.mxu0 0
        %1036 = vmatprep.subr.bf16.mxu0 0
        %1037 = vmatpush1.bf16.msra.mxu0 0
        %1038 = vmatprep.subr.bf16.mxu0 0
        %1039 = vmatpush1.bf16.msra.mxu0 0
        %1040 = vmatprep.subr.bf16.mxu0 0
        %1041 = vmatpush1.bf16.msra.mxu0 0
        %1042 = vmatprep.subr.bf16.mxu0 0
        %1043 = vmatpush1.bf16.msra.mxu0 0
        %1044 = vmatprep.subr.bf16.mxu0 0
        %1045 = vmatpush1.bf16.msra.mxu0 0
        %1046 = vmatprep.subr.bf16.mxu0 0
        %1047 = vmatpush1.bf16.msra.mxu0 0
        %1048 = vmatprep.subr.bf16.mxu0 0
        %1049 = vmatpush1.bf16.msra.mxu0 0
        %1050 = vmatprep.subr.bf16.mxu0 0
        %1051 = vmatpush1.bf16.msra.mxu0 0
        %1052 = vmatprep.subr.bf16.mxu0 0
        %1053 = vmatpush1.bf16.msra.mxu0 0
        %1054 = vmatprep.mubr.bf16.mxu0 0
        %1055 = vmatmul.mubr.bf16.gmra.mrb[0].mxu0 %v1020
        %v1056 = vpop.f32.mrb[0].mxu0
        %v1057 = vadd.f32 0.0, %v1056
        %v1058 = vpop.f32.mrb[0].mxu0
        %v1059 = vpop.f32.mrb[0].mxu0
        %v1060 = vadd.f32 0.0, %v1059
        %v1061 = vpop.f32.mrb[0].mxu0
        %1062 = vdwg.mxu0
        %v1063 = vpack.c.bf16 %v1060, %v1057
        %v1064 = vld [vmem:[#allocation3] sm:$0xf]
        %v1065 = vld [vmem:[#allocation3 + $0x4] sm:$0xf]
        %v1066 = vld [vmem:[#allocation3 + $0x8] sm:$0xf]
        %v1067 = vld [vmem:[#allocation3 + $0xc] sm:$0xf]
        %v1068 = vld [vmem:[#allocation3 + $0x10] sm:$0xf]
        %v1069 = vld [vmem:[#allocation3 + $0x14] sm:$0xf]
        %v1070 = vld [vmem:[#allocation3 + $0x18] sm:$0xf]
        %v1071 = vld [vmem:[#allocation3 + $0x1c] sm:$0xf]
        %v1072 = vld [vmem:[#allocation3 + $0x20] sm:$0xf]
        %v1073 = vld [vmem:[#allocation3 + $0x24] sm:$0xf]
        %v1074 = vld [vmem:[#allocation3 + $0x28] sm:$0xf]
        %v1075 = vld [vmem:[#allocation3 + $0x2c] sm:$0xf]
        %v1076 = vld [vmem:[#allocation3 + $0x30] sm:$0xf]
        %v1077 = vld [vmem:[#allocation3 + $0x34] sm:$0xf]
        %v1078 = vld [vmem:[#allocation3 + $0x38] sm:$0xf]
        %v1079 = vld [vmem:[#allocation3 + $0x3c] sm:$0xf]
        %v1080 = vld [vmem:[%s5] sm:$0x1]
        %v1082 = vlaneseq
        %v1083 = vshrl.u32 %v1082, 7
        %v1084 = vsub.s32 0, %v1083
        %v1085 = vrot.slane %v1080, %v1084
        %v1103 = vunpack.c.l.b16 %v1064
        %v1104 = vunpack.c.l.b16 %v1065
        %v1105 = vunpack.c.l.b16 %v1066
        %v1106 = vunpack.c.l.b16 %v1067
        %v1107 = vunpack.c.l.b16 %v1068
        %v1108 = vunpack.c.l.b16 %v1069
        %v1109 = vunpack.c.l.b16 %v1070
        %v1110 = vunpack.c.l.b16 %v1071
        %v1111 = vunpack.c.l.b16 %v1072
        %v1112 = vunpack.c.l.b16 %v1073
        %v1113 = vunpack.c.l.b16 %v1074
        %v1114 = vunpack.c.l.b16 %v1075
        %v1115 = vunpack.c.l.b16 %v1076
        %v1116 = vunpack.c.l.b16 %v1077
        %v1117 = vunpack.c.l.b16 %v1078
        %v1118 = vunpack.c.l.b16 %v1079
        %v1119 = vpack.c.b16 %v1104, %v1103
        %v1120 = vpack.c.b16 %v1106, %v1105
        %v1121 = vpack.c.b16 %v1108, %v1107
        %v1122 = vpack.c.b16 %v1110, %v1109
        %v1123 = vpack.c.b16 %v1112, %v1111
        %v1124 = vpack.c.b16 %v1114, %v1113
        %v1125 = vpack.c.b16 %v1116, %v1115
        %v1126 = vpack.c.b16 %v1118, %v1117
        %1135 = vmatprep.subr.bf16.mxu0 0
        %1136 = vmatpush1.bf16.msra.mxu0 %v1119
        %1137 = vmatprep.subr.bf16.mxu0 0
        %1138 = vmatpush1.bf16.msra.mxu0 %v1120
        %1139 = vmatprep.subr.bf16.mxu0 0
        %1140 = vmatpush1.bf16.msra.mxu0 %v1121
        %1141 = vmatprep.subr.bf16.mxu0 0
        %1142 = vmatpush1.bf16.msra.mxu0 %v1122
        %1143 = vmatprep.subr.bf16.mxu0 0
        %1144 = vmatpush1.bf16.msra.mxu0 %v1123
        %1145 = vmatprep.subr.bf16.mxu0 0
        %1146 = vmatpush1.bf16.msra.mxu0 %v1124
        %1147 = vmatprep.subr.bf16.mxu0 0
        %1148 = vmatpush1.bf16.msra.mxu0 %v1125
        %1149 = vmatprep.subr.bf16.mxu0 0
        %1150 = vmatpush1.bf16.msra.mxu0 %v1126
        %1151 = vmatprep.subr.bf16.mxu0 0
        %1152 = vmatpush1.bf16.msra.mxu0 0
        %1153 = vmatprep.subr.bf16.mxu0 0
        %1154 = vmatpush1.bf16.msra.mxu0 0
        %1155 = vmatprep.subr.bf16.mxu0 0
        %1156 = vmatpush1.bf16.msra.mxu0 0
        %1157 = vmatprep.subr.bf16.mxu0 0
        %1158 = vmatpush1.bf16.msra.mxu0 0
        %1159 = vmatprep.subr.bf16.mxu0 0
        %1160 = vmatpush1.bf16.msra.mxu0 0
        %1161 = vmatprep.subr.bf16.mxu0 0
        %1162 = vmatpush1.bf16.msra.mxu0 0
        %1163 = vmatprep.subr.bf16.mxu0 0
        %1164 = vmatpush1.bf16.msra.mxu0 0
        %1165 = vmatprep.subr.bf16.mxu0 0
        %1166 = vmatpush1.bf16.msra.mxu0 0
        %1167 = vmatprep.mubr.bf16.mxu0 0
        %1168 = vmatmul.mubr.bf16.gmra.mrb[0].mxu0 %v1063
        %v1169 = vpop.f32.mrb[0].mxu0
        %v1170 = vadd.f32 %v1085, %v1169
        %v1171 = vpop.f32.mrb[0].mxu0
        %v1172 = vpop.f32.mrb[0].mxu0
        %v1173 = vadd.f32 %v1085, %v1172
        %v1174 = vpop.f32.mrb[0].mxu0
        %1175 = vdwg.mxu0
        %v1176 = vadd.f32 %v675, %v1170
        %v1177 = vadd.f32 %v676, %v1173
        %v1178 = vld [vmem:[%s6] sm:$0x1]
        %v1179 = vld [vmem:[%s7] sm:$0x1]
        %1180 = vadd.xlane.f32.xlu0 %v1176
        %v1181 = vpop.xlane.xlu0 %1180
        %1182 = vadd.xlane.f32.xlu0 %v1177
        %v1183 = vpop.xlane.xlu0 %1182
        %v1184 = vrcp.pop 128.0
        %v1185 = vmul.f32 %v1181, %v1184
        %v1186 = vmul.f32 %v1183, %v1184
        %v1187 = vsub.f32 %v1176, %v1185
        %v1188 = vsub.f32 %v1177, %v1186
        %v1189 = vmul.f32 %v1187, %v1187
        %v1190 = vmul.f32 %v1188, %v1188
        %1191 = vadd.xlane.f32.xlu0 %v1189
        %v1192 = vpop.xlane.xlu0 %1191
        %1193 = vadd.xlane.f32.xlu0 %v1190
        %v1194 = vpop.xlane.xlu0 %1193
        %v1195 = vmul.f32 %v1192, %v1184
        %v1196 = vmul.f32 %v1194, %v1184
        %v1197 = vadd.f32 %v1195, 1e-12
        %v1198 = vadd.f32 %v1196, 1e-12
        %v1199 = vrsqrt.pop %v1197
        %v1200 = vrsqrt.pop %v1198
        %v1201 = vmul.f32 %v1187, %v1199
        %v1202 = vmul.f32 %v1188, %v1200
        %v1204 = vlaneseq
        %v1205 = vshrl.u32 %v1204, 7
        %v1206 = vsub.s32 0, %v1205
        %v1207 = vrot.slane %v1178, %v1206
        %v1209 = vmul.f32 %v1201, %v1207
        %v1210 = vmul.f32 %v1202, %v1207
        %v1212 = vlaneseq
        %v1213 = vshrl.u32 %v1212, 7
        %v1214 = vsub.s32 0, %v1213
        %v1215 = vrot.slane %v1179, %v1214
        %v1217 = vadd.f32 %v1209, %v1215
        %v1218 = vadd.f32 %v1210, %v1215
        %v1219 = vpack.c.bf16 %v1218, %v1217
        %v1220 = vld [vmem:[#allocation5] sm:$0xff]
        %v1221 = vld [vmem:[#allocation5 + $0x8] sm:$0xff]
        %v1222 = vld [vmem:[#allocation5 + $0x10] sm:$0xff]
        %v1223 = vld [vmem:[#allocation5 + $0x18] sm:$0xff]
        %v1224 = vld [vmem:[#allocation5 + $0x20] sm:$0xff]
        %v1225 = vld [vmem:[#allocation5 + $0x28] sm:$0xff]
        %v1226 = vld [vmem:[#allocation5 + $0x30] sm:$0xff]
        %v1227 = vld [vmem:[#allocation5 + $0x38] sm:$0xff]
        %v1228 = vld [vmem:[#allocation5 + $0x40] sm:$0xff]
        %v1229 = vld [vmem:[#allocation5 + $0x48] sm:$0xff]
        %v1230 = vld [vmem:[#allocation5 + $0x50] sm:$0xff]
        %v1231 = vld [vmem:[#allocation5 + $0x58] sm:$0xff]
        %v1232 = vld [vmem:[#allocation5 + $0x60] sm:$0xff]
        %v1233 = vld [vmem:[#allocation5 + $0x68] sm:$0xff]
        %v1234 = vld [vmem:[#allocation5 + $0x70] sm:$0xff]
        %v1235 = vld [vmem:[#allocation5 + $0x78] sm:$0xff]
        %v1236 = vld [vmem:[%s9] sm:$0x3]
        %v1238 = vlaneseq
        %v1239 = vshrl.u32 %v1238, 7
        %v1240 = vsub.s32 0, %v1239
        %v1241 = vrot.slane %v1236, %v1240
        %v1242 = vlaneseq
        %v1243 = vshrl.u32 %v1242, 7
        %v1244 = vsub.s32 1, %v1243
        %v1245 = vrot.slane %v1236, %v1244
        %v1264 = vunpack.c.l.b16 %v1220
        %v1265 = vunpack.c.h.b16 %v1220
        %v1266 = vunpack.c.l.b16 %v1221
        %v1267 = vunpack.c.h.b16 %v1221
        %v1268 = vunpack.c.l.b16 %v1222
        %v1269 = vunpack.c.h.b16 %v1222
        %v1270 = vunpack.c.l.b16 %v1223
        %v1271 = vunpack.c.h.b16 %v1223
        %v1272 = vunpack.c.l.b16 %v1224
        %v1273 = vunpack.c.h.b16 %v1224
        %v1274 = vunpack.c.l.b16 %v1225
        %v1275 = vunpack.c.h.b16 %v1225
        %v1276 = vunpack.c.l.b16 %v1226
        %v1277 = vunpack.c.h.b16 %v1226
        %v1278 = vunpack.c.l.b16 %v1227
        %v1279 = vunpack.c.h.b16 %v1227
        %v1280 = vunpack.c.l.b16 %v1228
        %v1281 = vunpack.c.h.b16 %v1228
        %v1282 = vunpack.c.l.b16 %v1229
        %v1283 = vunpack.c.h.b16 %v1229
        %v1284 = vunpack.c.l.b16 %v1230
        %v1285 = vunpack.c.h.b16 %v1230
        %v1286 = vunpack.c.l.b16 %v1231
        %v1287 = vunpack.c.h.b16 %v1231
        %v1288 = vunpack.c.l.b16 %v1232
        %v1289 = vunpack.c.h.b16 %v1232
        %v1290 = vunpack.c.l.b16 %v1233
        %v1291 = vunpack.c.h.b16 %v1233
        %v1292 = vunpack.c.l.b16 %v1234
        %v1293 = vunpack.c.h.b16 %v1234
        %v1294 = vunpack.c.l.b16 %v1235
        %v1295 = vunpack.c.h.b16 %v1235
        %v1296 = vpack.c.b16 %v1266, %v1264
        %v1297 = vpack.c.b16 %v1267, %v1265
        %v1298 = vpack.c.b16 %v1270, %v1268
        %v1299 = vpack.c.b16 %v1271, %v1269
        %v1300 = vpack.c.b16 %v1274, %v1272
        %v1301 = vpack.c.b16 %v1275, %v1273
        %v1302 = vpack.c.b16 %v1278, %v1276
        %v1303 = vpack.c.b16 %v1279, %v1277
        %v1304 = vpack.c.b16 %v1282, %v1280
        %v1305 = vpack.c.b16 %v1283, %v1281
        %v1306 = vpack.c.b16 %v1286, %v1284
        %v1307 = vpack.c.b16 %v1287, %v1285
        %v1308 = vpack.c.b16 %v1290, %v1288
        %v1309 = vpack.c.b16 %v1291, %v1289
        %v1310 = vpack.c.b16 %v1294, %v1292
        %v1311 = vpack.c.b16 %v1295, %v1293
        %1328 = vmatprep.subr.bf16.mxu0 %v1297
        %1329 = vmatpush1.bf16.msra.mxu0 %v1296
        %1330 = vmatprep.subr.bf16.mxu0 %v1299
        %1331 = vmatpush1.bf16.msra.mxu0 %v1298
        %1332 = vmatprep.subr.bf16.mxu0 %v1301
        %1333 = vmatpush1.bf16.msra.mxu0 %v1300
        %1334 = vmatprep.subr.bf16.mxu0 %v1303
        %1335 = vmatpush1.bf16.msra.mxu0 %v1302
        %1336 = vmatprep.subr.bf16.mxu0 %v1305
        %1337 = vmatpush1.bf16.msra.mxu0 %v1304
        %1338 = vmatprep.subr.bf16.mxu0 %v1307
        %1339 = vmatpush1.bf16.msra.mxu0 %v1306
        %1340 = vmatprep.subr.bf16.mxu0 %v1309
        %1341 = vmatpush1.bf16.msra.mxu0 %v1308
        %1342 = vmatprep.subr.bf16.mxu0 %v1311
        %1343 = vmatpush1.bf16.msra.mxu0 %v1310
        %1344 = vmatprep.subr.bf16.mxu0 0
        %1345 = vmatpush1.bf16.msra.mxu0 0
        %1346 = vmatprep.subr.bf16.mxu0 0
        %1347 = vmatpush1.bf16.msra.mxu0 0
        %1348 = vmatprep.subr.bf16.mxu0 0
        %1349 = vmatpush1.bf16.msra.mxu0 0
        %1350 = vmatprep.subr.bf16.mxu0 0
        %1351 = vmatpush1.bf16.msra.mxu0 0
        %1352 = vmatprep.subr.bf16.mxu0 0
        %1353 = vmatpush1.bf16.msra.mxu0 0
        %1354 = vmatprep.subr.bf16.mxu0 0
        %1355 = vmatpush1.bf16.msra.mxu0 0
        %1356 = vmatprep.subr.bf16.mxu0 0
        %1357 = vmatpush1.bf16.msra.mxu0 0
        %1358 = vmatprep.subr.bf16.mxu0 0
        %1359 = vmatpush1.bf16.msra.mxu0 0
        %1360 = vmatprep.mubr.bf16.mxu0 0
        %1361 = vmatmul.mubr.bf16.gmra.mrb[0].mxu0 %v1219
        %v1362 = vpop.f32.mrb[0].mxu0
        %v1363 = vadd.f32 %v1241, %v1362
        %v1364 = vpop.f32.mrb[0].mxu0
        %v1365 = vadd.f32 %v1245, %v1364
        %v1366 = vpop.f32.mrb[0].mxu0
        %v1367 = vadd.f32 %v1241, %v1366
        %v1368 = vpop.f32.mrb[0].mxu0
        %v1369 = vadd.f32 %v1245, %v1368
        %1370 = vdwg.mxu0
        %v1371 = vmul.f32 %v1363, %v1363
        %v1372 = vmul.f32 %v1365, %v1365
        %v1373 = vmul.f32 %v1367, %v1367
        %v1374 = vmul.f32 %v1369, %v1369
        %v1375 = vmul.f32 %v1363, %v1371
        %v1376 = vmul.f32 %v1365, %v1372
        %v1377 = vmul.f32 %v1367, %v1373
        %v1378 = vmul.f32 %v1369, %v1374
        %v1379 = vmul.f32 %v1375, 0.044715
        %v1380 = vmul.f32 %v1376, 0.044715
        %v1381 = vmul.f32 %v1377, 0.044715
        %v1382 = vmul.f32 %v1378, 0.044715
        %v1383 = vadd.f32 %v1363, %v1379
        %v1384 = vadd.f32 %v1365, %v1380
        %v1385 = vadd.f32 %v1367, %v1381
        %v1386 = vadd.f32 %v1369, %v1382
        %v1387 = vmul.f32 %v1383, 0.7978846
        %v1388 = vmul.f32 %v1384, 0.7978846
        %v1389 = vmul.f32 %v1385, 0.7978846
        %v1390 = vmul.f32 %v1386, 0.7978846
        %v1391 = vtanh.pop %v1387
        %v1392 = vtanh.pop %v1388
        %v1393 = vtanh.pop %v1389
        %v1394 = vtanh.pop %v1390
        %v1395 = vadd.f32 %v1391, 1.0
        %v1396 = vadd.f32 %v1392, 1.0
        %v1397 = vadd.f32 %v1393, 1.0
        %v1398 = vadd.f32 %v1394, 1.0
        %v1399 = vmul.f32 %v1395, 0.5
        %v1400 = vmul.f32 %v1396, 0.5
        %v1401 = vmul.f32 %v1397, 0.5
        %v1402 = vmul.f32 %v1398, 0.5
        %v1403 = vmul.f32 %v1363, %v1399
        %v1404 = vmul.f32 %v1365, %v1400
        %v1405 = vmul.f32 %v1367, %v1401
        %v1406 = vmul.f32 %v1369, %v1402
        %v1407 = vpack.c.bf16 %v1405, %v1403
        %v1408 = vpack.c.bf16 %v1406, %v1404
        %v1409 = vld [vmem:[#allocation7] sm:$0xf]
        %v1410 = vld [vmem:[#allocation7 + $0x4] sm:$0xf]
        %v1411 = vld [vmem:[#allocation7 + $0x8] sm:$0xf]
        %v1412 = vld [vmem:[#allocation7 + $0xc] sm:$0xf]
        %v1413 = vld [vmem:[#allocation7 + $0x10] sm:$0xf]
        %v1414 = vld [vmem:[#allocation7 + $0x14] sm:$0xf]
        %v1415 = vld [vmem:[#allocation7 + $0x18] sm:$0xf]
        %v1416 = vld [vmem:[#allocation7 + $0x1c] sm:$0xf]
        %v1417 = vld [vmem:[#allocation7 + $0x20] sm:$0xf]
        %v1418 = vld [vmem:[#allocation7 + $0x24] sm:$0xf]
        %v1419 = vld [vmem:[#allocation7 + $0x28] sm:$0xf]
        %v1420 = vld [vmem:[#allocation7 + $0x2c] sm:$0xf]
        %v1421 = vld [vmem:[#allocation7 + $0x30] sm:$0xf]
        %v1422 = vld [vmem:[#allocation7 + $0x34] sm:$0xf]
        %v1423 = vld [vmem:[#allocation7 + $0x38] sm:$0xf]
        %v1424 = vld [vmem:[#allocation7 + $0x3c] sm:$0xf]
        %v1425 = vld [vmem:[#allocation7 + $0x40] sm:$0xf]
        %v1426 = vld [vmem:[#allocation7 + $0x44] sm:$0xf]
        %v1427 = vld [vmem:[#allocation7 + $0x48] sm:$0xf]
        %v1428 = vld [vmem:[#allocation7 + $0x4c] sm:$0xf]
        %v1429 = vld [vmem:[#allocation7 + $0x50] sm:$0xf]
        %v1430 = vld [vmem:[#allocation7 + $0x54] sm:$0xf]
        %v1431 = vld [vmem:[#allocation7 + $0x58] sm:$0xf]
        %v1432 = vld [vmem:[#allocation7 + $0x5c] sm:$0xf]
        %v1433 = vld [vmem:[#allocation7 + $0x60] sm:$0xf]
        %v1434 = vld [vmem:[#allocation7 + $0x64] sm:$0xf]
        %v1435 = vld [vmem:[#allocation7 + $0x68] sm:$0xf]
        %v1436 = vld [vmem:[#allocation7 + $0x6c] sm:$0xf]
        %v1437 = vld [vmem:[#allocation7 + $0x70] sm:$0xf]
        %v1438 = vld [vmem:[#allocation7 + $0x74] sm:$0xf]
        %v1439 = vld [vmem:[#allocation7 + $0x78] sm:$0xf]
        %v1440 = vld [vmem:[#allocation7 + $0x7c] sm:$0xf]
        %v1441 = vld [vmem:[%s11] sm:$0x1]
        %v1443 = vlaneseq
        %v1444 = vshrl.u32 %v1443, 7
        %v1445 = vsub.s32 0, %v1444
        %v1446 = vrot.slane %v1441, %v1445
        %v1480 = vunpack.c.l.b16 %v1409
        %v1481 = vunpack.c.l.b16 %v1410
        %v1482 = vunpack.c.l.b16 %v1411
        %v1483 = vunpack.c.l.b16 %v1412
        %v1484 = vunpack.c.l.b16 %v1413
        %v1485 = vunpack.c.l.b16 %v1414
        %v1486 = vunpack.c.l.b16 %v1415
        %v1487 = vunpack.c.l.b16 %v1416
        %v1488 = vunpack.c.l.b16 %v1417
        %v1489 = vunpack.c.l.b16 %v1418
        %v1490 = vunpack.c.l.b16 %v1419
        %v1491 = vunpack.c.l.b16 %v1420
        %v1492 = vunpack.c.l.b16 %v1421
        %v1493 = vunpack.c.l.b16 %v1422
        %v1494 = vunpack.c.l.b16 %v1423
        %v1495 = vunpack.c.l.b16 %v1424
        %v1496 = vunpack.c.l.b16 %v1425
        %v1497 = vunpack.c.l.b16 %v1426
        %v1498 = vunpack.c.l.b16 %v1427
        %v1499 = vunpack.c.l.b16 %v1428
        %v1500 = vunpack.c.l.b16 %v1429
        %v1501 = vunpack.c.l.b16 %v1430
        %v1502 = vunpack.c.l.b16 %v1431
        %v1503 = vunpack.c.l.b16 %v1432
        %v1504 = vunpack.c.l.b16 %v1433
        %v1505 = vunpack.c.l.b16 %v1434
        %v1506 = vunpack.c.l.b16 %v1435
        %v1507 = vunpack.c.l.b16 %v1436
        %v1508 = vunpack.c.l.b16 %v1437
        %v1509 = vunpack.c.l.b16 %v1438
        %v1510 = vunpack.c.l.b16 %v1439
        %v1511 = vunpack.c.l.b16 %v1440
        %v1512 = vpack.c.b16 %v1481, %v1480
        %v1513 = vpack.c.b16 %v1483, %v1482
        %v1514 = vpack.c.b16 %v1485, %v1484
        %v1515 = vpack.c.b16 %v1487, %v1486
        %v1516 = vpack.c.b16 %v1489, %v1488
        %v1517 = vpack.c.b16 %v1491, %v1490
        %v1518 = vpack.c.b16 %v1493, %v1492
        %v1519 = vpack.c.b16 %v1495, %v1494
        %v1520 = vpack.c.b16 %v1497, %v1496
        %v1521 = vpack.c.b16 %v1499, %v1498
        %v1522 = vpack.c.b16 %v1501, %v1500
        %v1523 = vpack.c.b16 %v1503, %v1502
        %v1524 = vpack.c.b16 %v1505, %v1504
        %v1525 = vpack.c.b16 %v1507, %v1506
        %v1526 = vpack.c.b16 %v1509, %v1508
        %v1527 = vpack.c.b16 %v1511, %v1510
        %1544 = vmatprep.subr.bf16.mxu0 0
        %1545 = vmatpush1.bf16.msra.mxu0 %v1512
        %1546 = vmatprep.subr.bf16.mxu0 0
        %1547 = vmatpush1.bf16.msra.mxu0 %v1513
        %1548 = vmatprep.subr.bf16.mxu0 0
        %1549 = vmatpush1.bf16.msra.mxu0 %v1514
        %1550 = vmatprep.subr.bf16.mxu0 0
        %1551 = vmatpush1.bf16.msra.mxu0 %v1515
        %1552 = vmatprep.subr.bf16.mxu0 0
        %1553 = vmatpush1.bf16.msra.mxu0 %v1516
        %1554 = vmatprep.subr.bf16.mxu0 0
        %1555 = vmatpush1.bf16.msra.mxu0 %v1517
        %1556 = vmatprep.subr.bf16.mxu0 0
        %1557 = vmatpush1.bf16.msra.mxu0 %v1518
        %1558 = vmatprep.subr.bf16.mxu0 0
        %1559 = vmatpush1.bf16.msra.mxu0 %v1519
        %1560 = vmatprep.subr.bf16.mxu0 0
        %1561 = vmatpush1.bf16.msra.mxu0 %v1520
        %1562 = vmatprep.subr.bf16.mxu0 0
        %1563 = vmatpush1.bf16.msra.mxu0 %v1521
        %1564 = vmatprep.subr.bf16.mxu0 0
        %1565 = vmatpush1.bf16.msra.mxu0 %v1522
        %1566 = vmatprep.subr.bf16.mxu0 0
        %1567 = vmatpush1.bf16.msra.mxu0 %v1523
        %1568 = vmatprep.subr.bf16.mxu0 0
        %1569 = vmatpush1.bf16.msra.mxu0 %v1524
        %1570 = vmatprep.subr.bf16.mxu0 0
        %1571 = vmatpush1.bf16.msra.mxu0 %v1525
        %1572 = vmatprep.subr.bf16.mxu0 0
        %1573 = vmatpush1.bf16.msra.mxu0 %v1526
        %1574 = vmatprep.subr.bf16.mxu0 0
        %1575 = vmatpush1.bf16.msra.mxu0 %v1527
        %1576 = vmatprep.mubr.bf16.mxu0 %v1408
        %1577 = vmatmul.mubr.bf16.gmra.mrb[0].mxu0 %v1407
        %v1578 = vpop.f32.mrb[0].mxu0
        %v1579 = vadd.f32 %v1446, %v1578
        %v1580 = vpop.f32.mrb[0].mxu0
        %v1581 = vpop.f32.mrb[0].mxu0
        %v1582 = vadd.f32 %v1446, %v1581
        %v1583 = vpop.f32.mrb[0].mxu0
        %1584 = vdwg.mxu0
        %v1585 = vadd.f32 %v1217, %v1579
        %v1586 = vadd.f32 %v1218, %v1582
        %v1587 = vld [vmem:[%s12] sm:$0x1]
        %v1588 = vld [vmem:[%s13] sm:$0x1]
        %1589 = vadd.xlane.f32.xlu0 %v1585
        %v1590 = vpop.xlane.xlu0 %1589
        %1591 = vadd.xlane.f32.xlu0 %v1586
        %v1592 = vpop.xlane.xlu0 %1591
        %v1593 = vmul.f32 %v1590, %v1184
        %v1594 = vmul.f32 %v1592, %v1184
        %v1595 = vsub.f32 %v1585, %v1593
        %v1596 = vsub.f32 %v1586, %v1594
        %v1597 = vmul.f32 %v1595, %v1595
        %v1598 = vmul.f32 %v1596, %v1596
        %1599 = vadd.xlane.f32.xlu0 %v1597
        %v1600 = vpop.xlane.xlu0 %1599
        %1601 = vadd.xlane.f32.xlu0 %v1598
        %v1602 = vpop.xlane.xlu0 %1601
        %v1603 = vmul.f32 %v1600, %v1184
        %v1604 = vmul.f32 %v1602, %v1184
        %v1605 = vadd.f32 %v1603, 1e-12
        %v1606 = vadd.f32 %v1604, 1e-12
        %v1607 = vrsqrt.pop %v1605
        %v1608 = vrsqrt.pop %v1606
        %v1609 = vmul.f32 %v1595, %v1607
        %v1610 = vmul.f32 %v1596, %v1608
        %v1612 = vlaneseq
        %v1613 = vshrl.u32 %v1612, 7
        %v1614 = vsub.s32 0, %v1613
        %v1615 = vrot.slane %v1587, %v1614
        %v1617 = vmul.f32 %v1609, %v1615
        %v1618 = vmul.f32 %v1610, %v1615
        %v1620 = vlaneseq
        %v1621 = vshrl.u32 %v1620, 7
        %v1622 = vsub.s32 0, %v1621
        %v1623 = vrot.slane %v1588, %v1622
        %v1625 = vadd.f32 %v1617, %v1623
        %v1626 = vadd.f32 %v1618, %v1623
        %v1627 = vpack.c.bf16 %v1626, %v1625
        %v1629 = vunpack.c.l.b16 %v1627
        %v1630 = vunpack.c.h.b16 %v1627
        %v1631 = vpack.c.b16 %v1629, %v1629
        %v1632 = vpack.c.b16 %v1630, %v1630
        %1635 = vst [vmem:[%s668] sm:$0xf] %v1631
        %1636 = vst [vmem:[%s668 + $0x4] sm:$0xf] %v1632
        %v1637 = vpack.c.bf16 %v1625, %v1625
        %v1638 = vld [vmem:[%s14] sm:$0xf]
        %v1639 = vld [vmem:[%s14 + $0x4] sm:$0xf]
        %v1640 = vld [vmem:[%s14 + $0x8] sm:$0xf]
        %v1641 = vld [vmem:[%s14 + $0xc] sm:$0xf]
        %v1642 = vld [vmem:[%s14 + $0x10] sm:$0xf]
        %v1643 = vld [vmem:[%s14 + $0x14] sm:$0xf]
        %v1644 = vld [vmem:[%s14 + $0x18] sm:$0xf]
        %v1645 = vld [vmem:[%s14 + $0x1c] sm:$0xf]
        %v1646 = vld [vmem:[%s14 + $0x20] sm:$0xf]
        %v1647 = vld [vmem:[%s14 + $0x24] sm:$0xf]
        %v1648 = vld [vmem:[%s14 + $0x28] sm:$0xf]
        %v1649 = vld [vmem:[%s14 + $0x2c] sm:$0xf]
        %v1650 = vld [vmem:[%s14 + $0x30] sm:$0xf]
        %v1651 = vld [vmem:[%s14 + $0x34] sm:$0xf]
        %v1652 = vld [vmem:[%s14 + $0x38] sm:$0xf]
        %v1653 = vld [vmem:[%s14 + $0x3c] sm:$0xf]
        %v1654 = vld [vmem:[%s15] sm:$0x1]
        %v1671 = vunpack.c.l.b16 %v1638
        %v1672 = vunpack.c.l.b16 %v1639
        %v1673 = vunpack.c.l.b16 %v1640
        %v1674 = vunpack.c.l.b16 %v1641
        %v1675 = vunpack.c.l.b16 %v1642
        %v1676 = vunpack.c.l.b16 %v1643
        %v1677 = vunpack.c.l.b16 %v1644
        %v1678 = vunpack.c.l.b16 %v1645
        %v1679 = vunpack.c.l.b16 %v1646
        %v1680 = vunpack.c.l.b16 %v1647
        %v1681 = vunpack.c.l.b16 %v1648
        %v1682 = vunpack.c.l.b16 %v1649
        %v1683 = vunpack.c.l.b16 %v1650
        %v1684 = vunpack.c.l.b16 %v1651
        %v1685 = vunpack.c.l.b16 %v1652
        %v1686 = vunpack.c.l.b16 %v1653
        %v1687 = vpack.c.b16 %v1672, %v1671
        %v1688 = vpack.c.b16 %v1674, %v1673
        %v1689 = vpack.c.b16 %v1676, %v1675
        %v1690 = vpack.c.b16 %v1678, %v1677
        %v1691 = vpack.c.b16 %v1680, %v1679
        %v1692 = vpack.c.b16 %v1682, %v1681
        %v1693 = vpack.c.b16 %v1684, %v1683
        %v1694 = vpack.c.b16 %v1686, %v1685
        %1703 = vmatprep.subr.bf16.mxu0 0
        %1704 = vmatpush1.bf16.msra.mxu0 %v1687
        %1705 = vmatprep.subr.bf16.mxu0 0
        %1706 = vmatpush1.bf16.msra.mxu0 %v1688
        %1707 = vmatprep.subr.bf16.mxu0 0
        %1708 = vmatpush1.bf16.msra.mxu0 %v1689
        %1709 = vmatprep.subr.bf16.mxu0 0
        %1710 = vmatpush1.bf16.msra.mxu0 %v1690
        %1711 = vmatprep.subr.bf16.mxu0 0
        %1712 = vmatpush1.bf16.msra.mxu0 %v1691
        %1713 = vmatprep.subr.bf16.mxu0 0
        %1714 = vmatpush1.bf16.msra.mxu0 %v1692
        %1715 = vmatprep.subr.bf16.mxu0 0
        %1716 = vmatpush1.bf16.msra.mxu0 %v1693
        %1717 = vmatprep.subr.bf16.mxu0 0
        %1718 = vmatpush1.bf16.msra.mxu0 %v1694
        %1719 = vmatprep.subr.bf16.mxu0 0
        %1720 = vmatpush1.bf16.msra.mxu0 0
        %1721 = vmatprep.subr.bf16.mxu0 0
        %1722 = vmatpush1.bf16.msra.mxu0 0
        %1723 = vmatprep.subr.bf16.mxu0 0
        %1724 = vmatpush1.bf16.msra.mxu0 0
        %1725 = vmatprep.subr.bf16.mxu0 0
        %1726 = vmatpush1.bf16.msra.mxu0 0
        %1727 = vmatprep.subr.bf16.mxu0 0
        %1728 = vmatpush1.bf16.msra.mxu0 0
        %1729 = vmatprep.subr.bf16.mxu0 0
        %1730 = vmatpush1.bf16.msra.mxu0 0
        %1731 = vmatprep.subr.bf16.mxu0 0
        %1732 = vmatpush1.bf16.msra.mxu0 0
        %1733 = vmatprep.subr.bf16.mxu0 0
        %1734 = vmatpush1.bf16.msra.mxu0 0
        %1735 = vmatprep.mubr.bf16.mxu0 0
        %1736 = vmatmul.mubr.bf16.gmra.mrb[0].mxu0 %v1637
        %v1737 = vpop.f32.mrb[0].mxu0
        %v1738 = vadd.f32 %v1654, %v1737
        %v1739 = vpop.f32.mrb[0].mxu0
        %v1740 = vpop.f32.mrb[0].mxu0
        %v1741 = vpop.f32.mrb[0].mxu0
        %1742 = vdwg.mxu0
        %v1743 = vld [vmem:[%s16] sm:$0x1]
        %v1744 = vmul.f32 %v1738, %v1743
        %vm1745 = vcmask 516096
        %v1746 = vsel %vm1745, %v1744, 0.0
        %1747 = vadd.xlane.f32.xlu0 %v1746
        %v1748 = vpop.xlane.xlu0 %1747
        %v1749 = vld [vmem:[#allocation2] sm:$0x1]
        %v1750 = vadd.f32 %v1748, %v1749
        %v1751 = vxor.u32 %v1750, 2147483648
        %v1752 = vmul.f32 %v1751, 1.442695
        %v1753 = vpow.pop %v1752
        %v1754 = vadd.f32 %v1753, 1.0
        %v1755 = vrcp.pop %v1754
        %v1756 = vmul.f32 1.0, %v1755
        %vm1757 = vcmask 0
        %1758 = vst.msk [vmem:[%s671] sm:$0x1] %vm1757, %v1756
        %p1759 = scmp.lt.s32.totalorder %s35, 1
        %s1760 = scalar_select %p1759, %s35, 1
        %s1761 = smul.addr %s1760, 2
        %s1762 = smul.addr %s1761, 4
        %s1763 = scalar_lea.vmem %s18, %s1762
        %p1764 = scmp.lt.s32.totalorder %s35, 1
        %s1765 = scalar_select %p1764, %s35, 1
        %s1766 = scalar_lea.vmem %s19, %s1765
        // Predicated region
        $region105: #{our_transformer_forward.1} parent=91 // pred_check
          %p1767 = pneg %p441
        $region106: #{our_transformer_forward.1} parent=91 // pred_check_branch
          %1769 = sbr.rel (%p1767) target = $region108
        $region107: #{our_transformer_forward.1} parent=91 // pred_region
          _
        $region108: #{our_transformer_forward.1} parent=91 // pred_fallthru
          _
        // Predicated region
        $region109: #{our_transformer_forward.1} parent=91 // pred_check
          %p1770 = pneg %p467
        $region110: #{our_transformer_forward.1} parent=91 // pred_check_branch
          %1772 = sbr.rel (%p1770) target = $region112
        $region111: #{our_transformer_forward.1} parent=91 // pred_region
          _
        $region112: #{our_transformer_forward.1} parent=91 // pred_fallthru
          _
      $region92: #{our_transformer_forward.1} parent=5 // pred_fallthru
        _
      %p1773 = scmp.le.s32.totalorder 2, %s30
      // Predicated region
      $region113: #{our_transformer_forward.1} parent=5 // pred_check
        %p1774 = pneg %p1773
      $region114: #{our_transformer_forward.1} parent=5 // pred_check_branch
        %1776 = sbr.rel (%p1774) target = $region116
      $region115: #{our_transformer_forward.1} parent=5 // pred_region
        %s1777 = ssub.s32 %s30, 2
        // Predicated region
        $region117: #{our_transformer_forward.1} parent=115 // pred_check
          %p1778 = pneg %p447
        $region118: #{our_transformer_forward.1} parent=115 // pred_check_branch
          %1780 = sbr.rel (%p1778) target = $region120
        $region119: #{our_transformer_forward.1} parent=115 // pred_region
          %p1781 = scmp.lt.s32.totalorder %s36, 1
          %s1782 = scalar_select %p1781, %s36, 1
          %s1783 = smul.addr %s1782, 2
          %s1784 = smul.addr %s1783, 4
          %s1785 = scalar_lea.vmem %s18, %s1784
        $region120: #{our_transformer_forward.1} parent=115 // pred_fallthru
          _
        // Predicated region
        $region121: #{our_transformer_forward.1} parent=115 // pred_check
          %p1786 = pneg %p473
        $region122: #{our_transformer_forward.1} parent=115 // pred_check_branch
          %1788 = sbr.rel (%p1786) target = $region124
        $region123: #{our_transformer_forward.1} parent=115 // pred_region
          %p1789 = scmp.lt.s32.totalorder %s36, 1
          %s1790 = scalar_select %p1789, %s36, 1
          %s1791 = scalar_lea.vmem %s19, %s1790
        $region124: #{our_transformer_forward.1} parent=115 // pred_fallthru
          _
      $region116: #{our_transformer_forward.1} parent=5 // pred_fallthru
        _
    $region6: #{our_transformer_forward.1} parent=1 // loop_footer
      %s34 = sadd.s32 1, %s30
    $region7: #{our_transformer_forward.1} parent=1 // loop_footer_branch
      %29 = sbr.rel target = $region3
    $region8: #{our_transformer_forward.1} parent=1 // loop_exit
      _
    %1792 = vsyncpa [#allocation4], 1
    %s1793 = scalar_lea.sflag [#allocation4], 1
    %1794 = vsyncpa %s1793, 1
    %1795 = vsyncpa [#allocation6], 1

</llo_original>
